<compile_context>
chip_gen: v5e
topology: v5e:2x2
jax: 0.10.0
libtpu: 0.0.40
codegen_flags: <defaults>
</compile_context>

<pallas_src>
import numpy as np

import jax
import jax.numpy as jnp
from jax.experimental import pallas as pl
from jax.experimental.pallas import tpu as pltpu


# ----------------------------------------------------------------------------
# Pallas kernel: fused matmul (bf16 MXU, f32 acc) + bias + per-column LeakyReLU
# ----------------------------------------------------------------------------
def _matmul_bias_act_kernel(a_ref, b_ref, bias_ref, slope_ref, o_ref):
    acc = jnp.dot(a_ref[...], b_ref[...], preferred_element_type=jnp.float32)
    acc = acc + bias_ref[...]                       # (1, N) broadcasts
    acc = jnp.where(acc >= 0.0, acc, acc * slope_ref[...])
    o_ref[...] = acc.astype(o_ref.dtype)


def _round_up(x, m):
    return ((x + m - 1) // m) * m


def matmul_bias_act(a, b, bias_row, slope_row):
    """a: (M, K)  b: (K, N) bf16  bias/slope: (1, N) f32  ->  (M, N) bf16."""
    M, K = a.shape
    Kb, N = b.shape
    assert K == Kb

    # Row tiling: a single full block when small; 256-row tiles (parallel grid,
    # double-buffered by BlockSpec pipelining) at real resolutions.
    TM = 256
    Mp = _round_up(M, 8)
    if Mp > TM:
        tm = TM
        Mp = _round_up(Mp, TM)
    else:
        tm = Mp

    a = a.astype(jnp.bfloat16)
    if Mp != M:                                   # demo shapes: never triggers
        a = jnp.pad(a, ((0, Mp - M), (0, 0)))
    grid_m = Mp // tm

    flops = 2 * Mp * K * N
    bytes_accessed = 2 * (Mp * K + K * N + Mp * N) + 8 * N

    out = pl.pallas_call(
        _matmul_bias_act_kernel,
        out_shape=jax.ShapeDtypeStruct((Mp, N), jnp.bfloat16),
        grid=(grid_m,),
        in_specs=[
            pl.BlockSpec((tm, K), lambda i: (i, 0)),
            pl.BlockSpec((K, N), lambda i: (0, 0)),
            pl.BlockSpec((1, N), lambda i: (0, 0)),
            pl.BlockSpec((1, N), lambda i: (0, 0)),
        ],
        out_specs=pl.BlockSpec((tm, N), lambda i: (i, 0)),
        compiler_params=pltpu.CompilerParams(
            dimension_semantics=("parallel",),
            vmem_limit_bytes=32 * 1024 * 1024,
        ),
        cost_estimate=pl.CostEstimate(
            flops=flops, transcendentals=0, bytes_accessed=bytes_accessed),
    )(a, b, bias_row, slope_row)

    if Mp != M:
        out = out[:M]
    return out


# ----------------------------------------------------------------------------
# XLA-side glue: NHWC im2col (slices + channel concat; no transpose), and the
# sub-pixel phase interleave for transposed convs.
# ----------------------------------------------------------------------------
def _im2col_nhwc(x, k, stride, pad):
    """x: (B, H, W, C) -> (B*Ho*Wo, k*k*C) with feature order (di, dj, c)."""
    B, H, W, C = x.shape
    x_p = jnp.pad(x, ((0, 0), (pad, pad), (pad, pad), (0, 0)))
    Ho = (H + 2 * pad - k) // stride + 1
    Wo = (W + 2 * pad - k) // stride + 1
    taps = []
    for di in range(k):
        for dj in range(k):
            taps.append(x_p[:, di:di + stride * Ho:stride,
                               dj:dj + stride * Wo:stride, :])
    cols = jnp.concatenate(taps, axis=-1)          # (B, Ho, Wo, k*k*C)
    return cols.reshape(B * Ho * Wo, k * k * C), Ho, Wo


def _interleave_phases(y, B, H, W, cout):
    """y: (B*H*W, 4*cout) grouped (r, c, cout) -> (B, 2H, 2W, cout)."""
    y = y.reshape(B, H, W, 2, 2, cout).transpose(0, 1, 3, 2, 4, 5)
    return y.reshape(B, 2 * H, 2 * W, cout)


def _deconv_as_conv3_weight(w_t):
    """ConvTranspose2d(k=4,s=2,p=1) weight (Cin, Cout, 4, 4) -> equivalent
    stride-1 3x3 conv weight (9*Cin, 4*Cout); column groups are the 4 output
    sub-pixel phases (r, c)."""
    w = np.asarray(w_t, dtype=np.float32)
    cin, cout = w.shape[0], w.shape[1]
    out = np.zeros((3, 3, cin, 4, cout), np.float32)
    for r in range(2):
        for c in range(2):
            g = r * 2 + c
            for di in (r, r + 1):
                kh = 3 + r - 2 * di
                for dj in (c, c + 1):
                    kw = 3 + c - 2 * dj
                    out[di, dj, :, g, :] = w[:, :, kh, kw]
    return jnp.asarray(out.reshape(9 * cin, 4 * cout))


# ----------------------------------------------------------------------------
# Layer wrappers (NHWC activations)
# ----------------------------------------------------------------------------
def conv_layer(x, layer, stride):
    B = x.shape[0]
    cols, Ho, Wo = _im2col_nhwc(x, 3, stride, 1)
    out = matmul_bias_act(cols, layer["w"], layer["b"], layer["s"])
    return out.reshape(B, Ho, Wo, -1)


def deconv_layer(x, layer):
    B, H, W, _ = x.shape
    cols, _, _ = _im2col_nhwc(x, 3, 1, 1)
    out = matmul_bias_act(cols, layer["w"], layer["b"], layer["s"])
    cout = out.shape[-1] // 4
    return _interleave_phases(out, B, H, W, cout)


def decoder_head(feat_, layer):
    """Fused pred_flow conv (no act) + upfeat deconv (leaky): one pallas_call."""
    B, H, W, _ = feat_.shape
    cols, _, _ = _im2col_nhwc(feat_, 3, 1, 1)
    out = matmul_bias_act(cols, layer["w"], layer["b"], layer["s"])
    flow = out[:, :2].reshape(B, H, W, 2)
    upfeat = _interleave_phases(out[:, 2:], B, H, W, UPFEAT_CH)
    return flow, upfeat


# ----------------------------------------------------------------------------
# Synthetic FlowNet-style estimator (deterministic weights)
# ----------------------------------------------------------------------------
LEAKY = 0.1
FLOW_DIV = 20.0
UPFEAT_CH = 8

ENC_CFG = [          # (name, in_ch, out_ch)   all k=3, stride=2, pad=1
    ("level1", 6, 8),
    ("level2", 8, 16),
    ("level3", 16, 32),
]
FLOW_LEVELS = ["level2", "level3"]
START_LEVEL = "level3"
DEC_IN_CH = {"level3": 32, "level2": 16 + UPFEAT_CH + 2}


def _init_params():
    key = jax.random.PRNGKey(0)
    params = {}

    def nxt():
        nonlocal key
        key, sub = jax.random.split(key)
        return sub

    for name, cin, cout in ENC_CFG:
        params[f"enc_{name}_w"] = 0.1 * jax.random.normal(nxt(), (cout, cin, 3, 3), jnp.float32)
        params[f"enc_{name}_b"] = 0.01 * jax.random.normal(nxt(), (cout,), jnp.float32)

    for level in FLOW_LEVELS:
        cin = DEC_IN_CH[level]
        params[f"dec_{level}_flow_w"] = 0.1 * jax.random.normal(nxt(), (2, cin, 3, 3), jnp.float32)
        params[f"dec_{level}_flow_b"] = 0.01 * jax.random.normal(nxt(), (2,), jnp.float32)
        params[f"dec_{level}_upfeat_w"] = 0.1 * jax.random.normal(nxt(), (cin, UPFEAT_CH, 4, 4), jnp.float32)
        params[f"dec_{level}_upfeat_b"] = 0.01 * jax.random.normal(nxt(), (UPFEAT_CH,), jnp.float32)
        params[f"dec_{level}_upflow_w"] = 0.1 * jax.random.normal(nxt(), (2, 2, 4, 4), jnp.float32)
        params[f"dec_{level}_upflow_b"] = 0.01 * jax.random.normal(nxt(), (2,), jnp.float32)
    return params


def _prepare_layers(params):
    """One-time weight prep: matmul-ready layouts, bf16 weights, f32 bias/slope."""
    layers = {}
    for name, cin, cout in ENC_CFG:
        w = params[f"enc_{name}_w"]                            # (Cout, Cin, 3, 3)
        wm = jnp.transpose(w, (2, 3, 1, 0)).reshape(9 * cin, cout)
        layers[f"enc_{name}"] = dict(
            w=wm.astype(jnp.bfloat16),
            b=params[f"enc_{name}_b"].reshape(1, cout).astype(jnp.float32),
            s=jnp.full((1, cout), LEAKY, jnp.float32),
        )

    for level in FLOW_LEVELS:
        cin = DEC_IN_CH[level]
        # pred_flow conv (identity activation) + upfeat deconv (leaky), fused.
        wf = params[f"dec_{level}_flow_w"]                      # (2, cin, 3, 3)
        wf_m = jnp.transpose(wf, (2, 3, 1, 0)).reshape(9 * cin, 2)
        wuf_m = _deconv_as_conv3_weight(params[f"dec_{level}_upfeat_w"])
        w_head = jnp.concatenate([wf_m, wuf_m], axis=1)
        b_head = jnp.concatenate([params[f"dec_{level}_flow_b"],
                                  jnp.tile(params[f"dec_{level}_upfeat_b"], 4)])
        s_head = jnp.concatenate([jnp.ones((2,), jnp.float32),
                                  jnp.full((4 * UPFEAT_CH,), LEAKY, jnp.float32)])
        layers[f"dec_{level}_head"] = dict(
            w=w_head.astype(jnp.bfloat16),
            b=b_head.reshape(1, -1).astype(jnp.float32),
            s=s_head.reshape(1, -1).astype(jnp.float32),
        )

        # upflow deconv (identity activation).
        wufl_m = _deconv_as_conv3_weight(params[f"dec_{level}_upflow_w"])
        layers[f"dec_{level}_upflow"] = dict(
            w=wufl_m.astype(jnp.bfloat16),
            b=jnp.tile(params[f"dec_{level}_upflow_b"], 4).reshape(1, -1).astype(jnp.float32),
            s=jnp.ones((1, 8), jnp.float32),
        )
    return layers


def flownet_forward(layers, imgs1, imgs2):
    """imgs1, imgs2: (B, 3, H, W) NCHW -> dict {level: flow (B, 2, h, w)} (f32)."""
    imgs = jnp.concatenate([imgs1, imgs2], axis=1)             # (B, 6, H, W)
    x = jnp.transpose(imgs, (0, 2, 3, 1)).astype(jnp.bfloat16)  # NHWC, bf16

    # Encoder
    feat = {}
    for name, _, _ in ENC_CFG:
        x = conv_layer(x, layers[f"enc_{name}"], stride=2)
        feat[name] = x

    # Decoder, coarse -> fine
    flow_pred = {}
    upfeat = None
    upflow = None
    for level in FLOW_LEVELS[::-1]:
        if level == START_LEVEL:
            feat_ = feat[level]
        else:
            feat_ = jnp.concatenate([feat[level], upfeat, upflow], axis=-1)
        flow, upfeat = decoder_head(feat_, layers[f"dec_{level}_head"])
        upflow = deconv_layer(flow, layers[f"dec_{level}_upflow"])
        flow_pred[level] = (jnp.transpose(flow, (0, 3, 1, 2)).astype(jnp.float32)
                            * FLOW_DIV)
    return flow_pred


if __name__ == "__main__":
    key = jax.random.PRNGKey(0)
    k1, k2 = jax.random.split(key)
    B, C, H, W = 2, 3, 16, 16
    imgs1 = jax.random.normal(k1, (B, C, H, W), jnp.float32)
    imgs2 = jax.random.normal(k2, (B, C, H, W), jnp.float32)

    params = _init_params()
    layers = _prepare_layers(params)

    fwd = jax.jit(flownet_forward)
    flow_pred = fwd(layers, imgs1, imgs2)
    for level, flow in flow_pred.items():
        flow = jax.block_until_ready(flow)
        assert flow.ndim == 4 and flow.shape[0] == B and flow.shape[1] == 2
        assert bool(jnp.all(jnp.isfinite(flow)))

    # level3: (B, 2, 2, 2), level2: (B, 2, 4, 4)
    assert flow_pred["level3"].shape == (B, 2, H // 8, W // 8)
    assert flow_pred["level2"].shape == (B, 2, H // 4, W // 4)
    print("KERNEL_OK")
</pallas_src>

<mosaic_0001>
module attributes {stable_mosaic.version = 11 : i64} {
  func.func @_matmul_bias_act_kernel(%arg0: i32, %arg1: memref<128x54xbf16, #tpu.memory_space<vmem>>, %arg2: memref<54x8xbf16, #tpu.memory_space<vmem>>, %arg3: memref<1x8xf32, #tpu.memory_space<vmem>>, %arg4: memref<1x8xf32, #tpu.memory_space<vmem>>, %arg5: memref<128x8xbf16, #tpu.memory_space<vmem>>) attributes {dimension_semantics = [#tpu.dimension_semantics<parallel>], iteration_bounds = array<i64: 1>, scalar_prefetch = 0 : i64, scratch_operands = 0 : i64, tpu.core_type = #tpu.core_type<tc>, window_params = [{transform_indices = @transform_0, window_bounds = array<i64: 128, 54>}, {pipeline_mode = #tpu.pipeline_mode<synchronous>, transform_indices = @transform_1, window_bounds = array<i64: 54, 8>}, {pipeline_mode = #tpu.pipeline_mode<synchronous>, transform_indices = @transform_2, window_bounds = array<i64: 1, 8>}, {pipeline_mode = #tpu.pipeline_mode<synchronous>, transform_indices = @transform_3, window_bounds = array<i64: 1, 8>}, {transform_indices = @transform_4, window_bounds = array<i64: 128, 8>}]} {
    %c0 = arith.constant 0 : index
    %c0_0 = arith.constant 0 : index
    %0 = vector.load %arg1[%c0, %c0_0] : memref<128x54xbf16, #tpu.memory_space<vmem>>, vector<128x54xbf16>
    %c0_1 = arith.constant 0 : index
    %c0_2 = arith.constant 0 : index
    %1 = vector.load %arg2[%c0_1, %c0_2] : memref<54x8xbf16, #tpu.memory_space<vmem>>, vector<54x8xbf16>
    %cst = arith.constant dense<0.000000e+00> : vector<128x8xf32>
    %2 = tpu.matmul %0, %1, %cst {dimension_numbers = #tpu.dot_dimension_numbers<[1], [0], [0], [1], [0, 0, 1, 1], [], []>} : vector<128x54xbf16>, vector<54x8xbf16>, vector<128x8xf32> -> vector<128x8xf32>
    %c0_3 = arith.constant 0 : index
    %c0_4 = arith.constant 0 : index
    %3 = vector.load %arg3[%c0_3, %c0_4] : memref<1x8xf32, #tpu.memory_space<vmem>>, vector<1x8xf32>
    %4 = vector.broadcast %3 : vector<1x8xf32> to vector<128x8xf32>
    %5 = arith.addf %2, %4 : vector<128x8xf32>
    %cst_5 = arith.constant 0.000000e+00 : f32
    %6 = vector.broadcast %cst_5 : f32 to vector<128x8xf32>
    %7 = arith.cmpf oge, %5, %6 : vector<128x8xf32>
    %c0_6 = arith.constant 0 : index
    %c0_7 = arith.constant 0 : index
    %8 = vector.load %arg4[%c0_6, %c0_7] : memref<1x8xf32, #tpu.memory_space<vmem>>, vector<1x8xf32>
    %9 = vector.broadcast %8 : vector<1x8xf32> to vector<128x8xf32>
    %10 = arith.mulf %5, %9 : vector<128x8xf32>
    %11 = arith.select %7, %5, %10 : vector<128x8xi1>, vector<128x8xf32>
    %12 = arith.truncf %11 : vector<128x8xf32> to vector<128x8xbf16>
    %c0_8 = arith.constant 0 : index
    %c0_9 = arith.constant 0 : index
    %13 = vector.load %arg5[%c0_8, %c0_9] : memref<128x8xbf16, #tpu.memory_space<vmem>>, vector<128x8xbf16>
    tpu.vector_store %arg5[%c0_8, %c0_9], %12 {strides = array<i32>} : memref<128x8xbf16, #tpu.memory_space<vmem>>, vector<128x8xbf16>,
    return
  }
  func.func @transform_0(%arg0: i32) -> (i32, i32) {
    %c0_i32 = arith.constant 0 : i32
    %c0_i32_0 = arith.constant 0 : i32
    return %arg0, %c0_i32 : i32, i32
  }
  func.func @transform_1(%arg0: i32) -> (i32, i32) {
    %c0_i32 = arith.constant 0 : i32
    %c0_i32_0 = arith.constant 0 : i32
    %c0_i32_1 = arith.constant 0 : i32
    return %c0_i32, %c0_i32_0 : i32, i32
  }
  func.func @transform_2(%arg0: i32) -> (i32, i32) {
    %c0_i32 = arith.constant 0 : i32
    %c0_i32_0 = arith.constant 0 : i32
    %c0_i32_1 = arith.constant 0 : i32
    return %c0_i32, %c0_i32_0 : i32, i32
  }
  func.func @transform_3(%arg0: i32) -> (i32, i32) {
    %c0_i32 = arith.constant 0 : i32
    %c0_i32_0 = arith.constant 0 : i32
    %c0_i32_1 = arith.constant 0 : i32
    return %c0_i32, %c0_i32_0 : i32, i32
  }
  func.func @transform_4(%arg0: i32) -> (i32, i32) {
    %c0_i32 = arith.constant 0 : i32
    %c0_i32_0 = arith.constant 0 : i32
    return %arg0, %c0_i32 : i32, i32
  }
}

module attributes {stable_mosaic.version = 11 : i64} {
  func.func @_matmul_bias_act_kernel(%arg0: i32, %arg1: memref<32x72xbf16, #tpu.memory_space<vmem>>, %arg2: memref<72x16xbf16, #tpu.memory_space<vmem>>, %arg3: memref<1x16xf32, #tpu.memory_space<vmem>>, %arg4: memref<1x16xf32, #tpu.memory_space<vmem>>, %arg5: memref<32x16xbf16, #tpu.memory_space<vmem>>) attributes {dimension_semantics = [#tpu.dimension_semantics<parallel>], iteration_bounds = array<i64: 1>, scalar_prefetch = 0 : i64, scratch_operands = 0 : i64, tpu.core_type = #tpu.core_type<tc>, window_params = [{transform_indices = @transform_0, window_bounds = array<i64: 32, 72>}, {pipeline_mode = #tpu.pipeline_mode<synchronous>, transform_indices = @transform_1, window_bounds = array<i64: 72, 16>}, {pipeline_mode = #tpu.pipeline_mode<synchronous>, transform_indices = @transform_2, window_bounds = array<i64: 1, 16>}, {pipeline_mode = #tpu.pipeline_mode<synchronous>, transform_indices = @transform_3, window_bounds = array<i64: 1, 16>}, {transform_indices = @transform_4, window_bounds = array<i64: 32, 16>}]} {
    %c0 = arith.constant 0 : index
    %c0_0 = arith.constant 0 : index
    %0 = vector.load %arg1[%c0, %c0_0] : memref<32x72xbf16, #tpu.memory_space<vmem>>, vector<32x72xbf16>
    %c0_1 = arith.constant 0 : index
    %c0_2 = arith.constant 0 : index
    %1 = vector.load %arg2[%c0_1, %c0_2] : memref<72x16xbf16, #tpu.memory_space<vmem>>, vector<72x16xbf16>
    %cst = arith.constant dense<0.000000e+00> : vector<32x16xf32>
    %2 = tpu.matmul %0, %1, %cst {dimension_numbers = #tpu.dot_dimension_numbers<[1], [0], [0], [1], [0, 0, 1, 1], [], []>} : vector<32x72xbf16>, vector<72x16xbf16>, vector<32x16xf32> -> vector<32x16xf32>
    %c0_3 = arith.constant 0 : index
    %c0_4 = arith.constant 0 : index
    %3 = vector.load %arg3[%c0_3, %c0_4] : memref<1x16xf32, #tpu.memory_space<vmem>>, vector<1x16xf32>
    %4 = vector.broadcast %3 : vector<1x16xf32> to vector<32x16xf32>
    %5 = arith.addf %2, %4 : vector<32x16xf32>
    %cst_5 = arith.constant 0.000000e+00 : f32
    %6 = vector.broadcast %cst_5 : f32 to vector<32x16xf32>
    %7 = arith.cmpf oge, %5, %6 : vector<32x16xf32>
    %c0_6 = arith.constant 0 : index
    %c0_7 = arith.constant 0 : index
    %8 = vector.load %arg4[%c0_6, %c0_7] : memref<1x16xf32, #tpu.memory_space<vmem>>, vector<1x16xf32>
    %9 = vector.broadcast %8 : vector<1x16xf32> to vector<32x16xf32>
    %10 = arith.mulf %5, %9 : vector<32x16xf32>
    %11 = arith.select %7, %5, %10 : vector<32x16xi1>, vector<32x16xf32>
    %12 = arith.truncf %11 : vector<32x16xf32> to vector<32x16xbf16>
    %c0_8 = arith.constant 0 : index
    %c0_9 = arith.constant 0 : index
    %13 = vector.load %arg5[%c0_8, %c0_9] : memref<32x16xbf16, #tpu.memory_space<vmem>>, vector<32x16xbf16>
    tpu.vector_store %arg5[%c0_8, %c0_9], %12 {strides = array<i32>} : memref<32x16xbf16, #tpu.memory_space<vmem>>, vector<32x16xbf16>,
    return
  }
  func.func @transform_0(%arg0: i32) -> (i32, i32) {
    %c0_i32 = arith.constant 0 : i32
    %c0_i32_0 = arith.constant 0 : i32
    return %arg0, %c0_i32 : i32, i32
  }
  func.func @transform_1(%arg0: i32) -> (i32, i32) {
    %c0_i32 = arith.constant 0 : i32
    %c0_i32_0 = arith.constant 0 : i32
    %c0_i32_1 = arith.constant 0 : i32
    return %c0_i32, %c0_i32_0 : i32, i32
  }
  func.func @transform_2(%arg0: i32) -> (i32, i32) {
    %c0_i32 = arith.constant 0 : i32
    %c0_i32_0 = arith.constant 0 : i32
    %c0_i32_1 = arith.constant 0 : i32
    return %c0_i32, %c0_i32_0 : i32, i32
  }
  func.func @transform_3(%arg0: i32) -> (i32, i32) {
    %c0_i32 = arith.constant 0 : i32
    %c0_i32_0 = arith.constant 0 : i32
    %c0_i32_1 = arith.constant 0 : i32
    return %c0_i32, %c0_i32_0 : i32, i32
  }
  func.func @transform_4(%arg0: i32) -> (i32, i32) {
    %c0_i32 = arith.constant 0 : i32
    %c0_i32_0 = arith.constant 0 : i32
    return %arg0, %c0_i32 : i32, i32
  }
}

module attributes {stable_mosaic.version = 11 : i64} {
  func.func @_matmul_bias_act_kernel(%arg0: i32, %arg1: memref<8x288xbf16, #tpu.memory_space<vmem>>, %arg2: memref<288x34xbf16, #tpu.memory_space<vmem>>, %arg3: memref<1x34xf32, #tpu.memory_space<vmem>>, %arg4: memref<1x34xf32, #tpu.memory_space<vmem>>, %arg5: memref<8x34xbf16, #tpu.memory_space<vmem>>) attributes {dimension_semantics = [#tpu.dimension_semantics<parallel>], iteration_bounds = array<i64: 1>, scalar_prefetch = 0 : i64, scratch_operands = 0 : i64, tpu.core_type = #tpu.core_type<tc>, window_params = [{transform_indices = @transform_0, window_bounds = array<i64: 8, 288>}, {pipeline_mode = #tpu.pipeline_mode<synchronous>, transform_indices = @transform_1, window_bounds = array<i64: 288, 34>}, {pipeline_mode = #tpu.pipeline_mode<synchronous>, transform_indices = @transform_2, window_bounds = array<i64: 1, 34>}, {pipeline_mode = #tpu.pipeline_mode<synchronous>, transform_indices = @transform_3, window_bounds = array<i64: 1, 34>}, {transform_indices = @transform_4, window_bounds = array<i64: 8, 34>}]} {
    %c0 = arith.constant 0 : index
    %c0_0 = arith.constant 0 : index
    %0 = vector.load %arg1[%c0, %c0_0] : memref<8x288xbf16, #tpu.memory_space<vmem>>, vector<8x288xbf16>
    %c0_1 = arith.constant 0 : index
    %c0_2 = arith.constant 0 : index
    %1 = vector.load %arg2[%c0_1, %c0_2] : memref<288x34xbf16, #tpu.memory_space<vmem>>, vector<288x34xbf16>
    %cst = arith.constant dense<0.000000e+00> : vector<8x34xf32>
    %2 = tpu.matmul %0, %1, %cst {dimension_numbers = #tpu.dot_dimension_numbers<[1], [0], [0], [1], [0, 0, 1, 1], [], []>} : vector<8x288xbf16>, vector<288x34xbf16>, vector<8x34xf32> -> vector<8x34xf32>
    %c0_3 = arith.constant 0 : index
    %c0_4 = arith.constant 0 : index
    %3 = vector.load %arg3[%c0_3, %c0_4] : memref<1x34xf32, #tpu.memory_space<vmem>>, vector<1x34xf32>
    %4 = vector.broadcast %3 : vector<1x34xf32> to vector<8x34xf32>
    %5 = arith.addf %2, %4 : vector<8x34xf32>
    %cst_5 = arith.constant 0.000000e+00 : f32
    %6 = vector.broadcast %cst_5 : f32 to vector<8x34xf32>
    %7 = arith.cmpf oge, %5, %6 : vector<8x34xf32>
    %c0_6 = arith.constant 0 : index
    %c0_7 = arith.constant 0 : index
    %8 = vector.load %arg4[%c0_6, %c0_7] : memref<1x34xf32, #tpu.memory_space<vmem>>, vector<1x34xf32>
    %9 = vector.broadcast %8 : vector<1x34xf32> to vector<8x34xf32>
    %10 = arith.mulf %5, %9 : vector<8x34xf32>
    %11 = arith.select %7, %5, %10 : vector<8x34xi1>, vector<8x34xf32>
    %12 = arith.truncf %11 : vector<8x34xf32> to vector<8x34xbf16>
    %c0_8 = arith.constant 0 : index
    %c0_9 = arith.constant 0 : index
    %13 = vector.load %arg5[%c0_8, %c0_9] : memref<8x34xbf16, #tpu.memory_space<vmem>>, vector<8x34xbf16>
    tpu.vector_store %arg5[%c0_8, %c0_9], %12 {strides = array<i32>} : memref<8x34xbf16, #tpu.memory_space<vmem>>, vector<8x34xbf16>,
    return
  }
  func.func @transform_0(%arg0: i32) -> (i32, i32) {
    %c0_i32 = arith.constant 0 : i32
    %c0_i32_0 = arith.constant 0 : i32
    return %arg0, %c0_i32 : i32, i32
  }
  func.func @transform_1(%arg0: i32) -> (i32, i32) {
    %c0_i32 = arith.constant 0 : i32
    %c0_i32_0 = arith.constant 0 : i32
    %c0_i32_1 = arith.constant 0 : i32
    return %c0_i32, %c0_i32_0 : i32, i32
  }
  func.func @transform_2(%arg0: i32) -> (i32, i32) {
    %c0_i32 = arith.constant 0 : i32
    %c0_i32_0 = arith.constant 0 : i32
    %c0_i32_1 = arith.constant 0 : i32
    return %c0_i32, %c0_i32_0 : i32, i32
  }
  func.func @transform_3(%arg0: i32) -> (i32, i32) {
    %c0_i32 = arith.constant 0 : i32
    %c0_i32_0 = arith.constant 0 : i32
    %c0_i32_1 = arith.constant 0 : i32
    return %c0_i32, %c0_i32_0 : i32, i32
  }
  func.func @transform_4(%arg0: i32) -> (i32, i32) {
    %c0_i32 = arith.constant 0 : i32
    %c0_i32_0 = arith.constant 0 : i32
    return %arg0, %c0_i32 : i32, i32
  }
}

module attributes {stable_mosaic.version = 11 : i64} {
  func.func @_matmul_bias_act_kernel(%arg0: i32, %arg1: memref<8x144xbf16, #tpu.memory_space<vmem>>, %arg2: memref<144x32xbf16, #tpu.memory_space<vmem>>, %arg3: memref<1x32xf32, #tpu.memory_space<vmem>>, %arg4: memref<1x32xf32, #tpu.memory_space<vmem>>, %arg5: memref<8x32xbf16, #tpu.memory_space<vmem>>) attributes {dimension_semantics = [#tpu.dimension_semantics<parallel>], iteration_bounds = array<i64: 1>, scalar_prefetch = 0 : i64, scratch_operands = 0 : i64, tpu.core_type = #tpu.core_type<tc>, window_params = [{transform_indices = @transform_0, window_bounds = array<i64: 8, 144>}, {pipeline_mode = #tpu.pipeline_mode<synchronous>, transform_indices = @transform_1, window_bounds = array<i64: 144, 32>}, {pipeline_mode = #tpu.pipeline_mode<synchronous>, transform_indices = @transform_2, window_bounds = array<i64: 1, 32>}, {pipeline_mode = #tpu.pipeline_mode<synchronous>, transform_indices = @transform_3, window_bounds = array<i64: 1, 32>}, {transform_indices = @transform_4, window_bounds = array<i64: 8, 32>}]} {
    %c0 = arith.constant 0 : index
    %c0_0 = arith.constant 0 : index
    %0 = vector.load %arg1[%c0, %c0_0] : memref<8x144xbf16, #tpu.memory_space<vmem>>, vector<8x144xbf16>
    %c0_1 = arith.constant 0 : index
    %c0_2 = arith.constant 0 : index
    %1 = vector.load %arg2[%c0_1, %c0_2] : memref<144x32xbf16, #tpu.memory_space<vmem>>, vector<144x32xbf16>
    %cst = arith.constant dense<0.000000e+00> : vector<8x32xf32>
    %2 = tpu.matmul %0, %1, %cst {dimension_numbers = #tpu.dot_dimension_numbers<[1], [0], [0], [1], [0, 0, 1, 1], [], []>} : vector<8x144xbf16>, vector<144x32xbf16>, vector<8x32xf32> -> vector<8x32xf32>
    %c0_3 = arith.constant 0 : index
    %c0_4 = arith.constant 0 : index
    %3 = vector.load %arg3[%c0_3, %c0_4] : memref<1x32xf32, #tpu.memory_space<vmem>>, vector<1x32xf32>
    %4 = vector.broadcast %3 : vector<1x32xf32> to vector<8x32xf32>
    %5 = arith.addf %2, %4 : vector<8x32xf32>
    %cst_5 = arith.constant 0.000000e+00 : f32
    %6 = vector.broadcast %cst_5 : f32 to vector<8x32xf32>
    %7 = arith.cmpf oge, %5, %6 : vector<8x32xf32>
    %c0_6 = arith.constant 0 : index
    %c0_7 = arith.constant 0 : index
    %8 = vector.load %arg4[%c0_6, %c0_7] : memref<1x32xf32, #tpu.memory_space<vmem>>, vector<1x32xf32>
    %9 = vector.broadcast %8 : vector<1x32xf32> to vector<8x32xf32>
    %10 = arith.mulf %5, %9 : vector<8x32xf32>
    %11 = arith.select %7, %5, %10 : vector<8x32xi1>, vector<8x32xf32>
    %12 = arith.truncf %11 : vector<8x32xf32> to vector<8x32xbf16>
    %c0_8 = arith.constant 0 : index
    %c0_9 = arith.constant 0 : index
    %13 = vector.load %arg5[%c0_8, %c0_9] : memref<8x32xbf16, #tpu.memory_space<vmem>>, vector<8x32xbf16>
    tpu.vector_store %arg5[%c0_8, %c0_9], %12 {strides = array<i32>} : memref<8x32xbf16, #tpu.memory_space<vmem>>, vector<8x32xbf16>,
    return
  }
  func.func @transform_0(%arg0: i32) -> (i32, i32) {
    %c0_i32 = arith.constant 0 : i32
    %c0_i32_0 = arith.constant 0 : i32
    return %arg0, %c0_i32 : i32, i32
  }
  func.func @transform_1(%arg0: i32) -> (i32, i32) {
    %c0_i32 = arith.constant 0 : i32
    %c0_i32_0 = arith.constant 0 : i32
    %c0_i32_1 = arith.constant 0 : i32
    return %c0_i32, %c0_i32_0 : i32, i32
  }
  func.func @transform_2(%arg0: i32) -> (i32, i32) {
    %c0_i32 = arith.constant 0 : i32
    %c0_i32_0 = arith.constant 0 : i32
    %c0_i32_1 = arith.constant 0 : i32
    return %c0_i32, %c0_i32_0 : i32, i32
  }
  func.func @transform_3(%arg0: i32) -> (i32, i32) {
    %c0_i32 = arith.constant 0 : i32
    %c0_i32_0 = arith.constant 0 : i32
    %c0_i32_1 = arith.constant 0 : i32
    return %c0_i32, %c0_i32_0 : i32, i32
  }
  func.func @transform_4(%arg0: i32) -> (i32, i32) {
    %c0_i32 = arith.constant 0 : i32
    %c0_i32_0 = arith.constant 0 : i32
    return %arg0, %c0_i32 : i32, i32
  }
}

module attributes {stable_mosaic.version = 11 : i64} {
  func.func @_matmul_bias_act_kernel(%arg0: i32, %arg1: memref<8x18xbf16, #tpu.memory_space<vmem>>, %arg2: memref<18x8xbf16, #tpu.memory_space<vmem>>, %arg3: memref<1x8xf32, #tpu.memory_space<vmem>>, %arg4: memref<1x8xf32, #tpu.memory_space<vmem>>, %arg5: memref<8x8xbf16, #tpu.memory_space<vmem>>) attributes {dimension_semantics = [#tpu.dimension_semantics<parallel>], iteration_bounds = array<i64: 1>, scalar_prefetch = 0 : i64, scratch_operands = 0 : i64, tpu.core_type = #tpu.core_type<tc>, window_params = [{transform_indices = @transform_0, window_bounds = array<i64: 8, 18>}, {pipeline_mode = #tpu.pipeline_mode<synchronous>, transform_indices = @transform_1, window_bounds = array<i64: 18, 8>}, {pipeline_mode = #tpu.pipeline_mode<synchronous>, transform_indices = @transform_2, window_bounds = array<i64: 1, 8>}, {pipeline_mode = #tpu.pipeline_mode<synchronous>, transform_indices = @transform_3, window_bounds = array<i64: 1, 8>}, {transform_indices = @transform_4, window_bounds = array<i64: 8, 8>}]} {
    %c0 = arith.constant 0 : index
    %c0_0 = arith.constant 0 : index
    %0 = vector.load %arg1[%c0, %c0_0] : memref<8x18xbf16, #tpu.memory_space<vmem>>, vector<8x18xbf16>
    %c0_1 = arith.constant 0 : index
    %c0_2 = arith.constant 0 : index
    %1 = vector.load %arg2[%c0_1, %c0_2] : memref<18x8xbf16, #tpu.memory_space<vmem>>, vector<18x8xbf16>
    %cst = arith.constant dense<0.000000e+00> : vector<8x8xf32>
    %2 = tpu.matmul %0, %1, %cst {dimension_numbers = #tpu.dot_dimension_numbers<[1], [0], [0], [1], [0, 0, 1, 1], [], []>} : vector<8x18xbf16>, vector<18x8xbf16>, vector<8x8xf32> -> vector<8x8xf32>
    %c0_3 = arith.constant 0 : index
    %c0_4 = arith.constant 0 : index
    %3 = vector.load %arg3[%c0_3, %c0_4] : memref<1x8xf32, #tpu.memory_space<vmem>>, vector<1x8xf32>
    %4 = vector.broadcast %3 : vector<1x8xf32> to vector<8x8xf32>
    %5 = arith.addf %2, %4 : vector<8x8xf32>
    %cst_5 = arith.constant 0.000000e+00 : f32
    %6 = vector.broadcast %cst_5 : f32 to vector<8x8xf32>
    %7 = arith.cmpf oge, %5, %6 : vector<8x8xf32>
    %c0_6 = arith.constant 0 : index
    %c0_7 = arith.constant 0 : index
    %8 = vector.load %arg4[%c0_6, %c0_7] : memref<1x8xf32, #tpu.memory_space<vmem>>, vector<1x8xf32>
    %9 = vector.broadcast %8 : vector<1x8xf32> to vector<8x8xf32>
    %10 = arith.mulf %5, %9 : vector<8x8xf32>
    %11 = arith.select %7, %5, %10 : vector<8x8xi1>, vector<8x8xf32>
    %12 = arith.truncf %11 : vector<8x8xf32> to vector<8x8xbf16>
    %c0_8 = arith.constant 0 : index
    %c0_9 = arith.constant 0 : index
    %13 = vector.load %arg5[%c0_8, %c0_9] : memref<8x8xbf16, #tpu.memory_space<vmem>>, vector<8x8xbf16>
    tpu.vector_store %arg5[%c0_8, %c0_9], %12 {strides = array<i32>} : memref<8x8xbf16, #tpu.memory_space<vmem>>, vector<8x8xbf16>,
    return
  }
  func.func @transform_0(%arg0: i32) -> (i32, i32) {
    %c0_i32 = arith.constant 0 : i32
    %c0_i32_0 = arith.constant 0 : i32
    return %arg0, %c0_i32 : i32, i32
  }
  func.func @transform_1(%arg0: i32) -> (i32, i32) {
    %c0_i32 = arith.constant 0 : i32
    %c0_i32_0 = arith.constant 0 : i32
    %c0_i32_1 = arith.constant 0 : i32
    return %c0_i32, %c0_i32_0 : i32, i32
  }
  func.func @transform_2(%arg0: i32) -> (i32, i32) {
    %c0_i32 = arith.constant 0 : i32
    %c0_i32_0 = arith.constant 0 : i32
    %c0_i32_1 = arith.constant 0 : i32
    return %c0_i32, %c0_i32_0 : i32, i32
  }
  func.func @transform_3(%arg0: i32) -> (i32, i32) {
    %c0_i32 = arith.constant 0 : i32
    %c0_i32_0 = arith.constant 0 : i32
    %c0_i32_1 = arith.constant 0 : i32
    return %c0_i32, %c0_i32_0 : i32, i32
  }
  func.func @transform_4(%arg0: i32) -> (i32, i32) {
    %c0_i32 = arith.constant 0 : i32
    %c0_i32_0 = arith.constant 0 : i32
    return %arg0, %c0_i32 : i32, i32
  }
}

module attributes {stable_mosaic.version = 11 : i64} {
  func.func @_matmul_bias_act_kernel(%arg0: i32, %arg1: memref<32x234xbf16, #tpu.memory_space<vmem>>, %arg2: memref<234x34xbf16, #tpu.memory_space<vmem>>, %arg3: memref<1x34xf32, #tpu.memory_space<vmem>>, %arg4: memref<1x34xf32, #tpu.memory_space<vmem>>, %arg5: memref<32x34xbf16, #tpu.memory_space<vmem>>) attributes {dimension_semantics = [#tpu.dimension_semantics<parallel>], iteration_bounds = array<i64: 1>, scalar_prefetch = 0 : i64, scratch_operands = 0 : i64, tpu.core_type = #tpu.core_type<tc>, window_params = [{transform_indices = @transform_0, window_bounds = array<i64: 32, 234>}, {pipeline_mode = #tpu.pipeline_mode<synchronous>, transform_indices = @transform_1, window_bounds = array<i64: 234, 34>}, {pipeline_mode = #tpu.pipeline_mode<synchronous>, transform_indices = @transform_2, window_bounds = array<i64: 1, 34>}, {pipeline_mode = #tpu.pipeline_mode<synchronous>, transform_indices = @transform_3, window_bounds = array<i64: 1, 34>}, {transform_indices = @transform_4, window_bounds = array<i64: 32, 34>}]} {
    %c0 = arith.constant 0 : index
    %c0_0 = arith.constant 0 : index
    %0 = vector.load %arg1[%c0, %c0_0] : memref<32x234xbf16, #tpu.memory_space<vmem>>, vector<32x234xbf16>
    %c0_1 = arith.constant 0 : index
    %c0_2 = arith.constant 0 : index
    %1 = vector.load %arg2[%c0_1, %c0_2] : memref<234x34xbf16, #tpu.memory_space<vmem>>, vector<234x34xbf16>
    %cst = arith.constant dense<0.000000e+00> : vector<32x34xf32>
    %2 = tpu.matmul %0, %1, %cst {dimension_numbers = #tpu.dot_dimension_numbers<[1], [0], [0], [1], [0, 0, 1, 1], [], []>} : vector<32x234xbf16>, vector<234x34xbf16>, vector<32x34xf32> -> vector<32x34xf32>
    %c0_3 = arith.constant 0 : index
    %c0_4 = arith.constant 0 : index
    %3 = vector.load %arg3[%c0_3, %c0_4] : memref<1x34xf32, #tpu.memory_space<vmem>>, vector<1x34xf32>
    %4 = vector.broadcast %3 : vector<1x34xf32> to vector<32x34xf32>
    %5 = arith.addf %2, %4 : vector<32x34xf32>
    %cst_5 = arith.constant 0.000000e+00 : f32
    %6 = vector.broadcast %cst_5 : f32 to vector<32x34xf32>
    %7 = arith.cmpf oge, %5, %6 : vector<32x34xf32>
    %c0_6 = arith.constant 0 : index
    %c0_7 = arith.constant 0 : index
    %8 = vector.load %arg4[%c0_6, %c0_7] : memref<1x34xf32, #tpu.memory_space<vmem>>, vector<1x34xf32>
    %9 = vector.broadcast %8 : vector<1x34xf32> to vector<32x34xf32>
    %10 = arith.mulf %5, %9 : vector<32x34xf32>
    %11 = arith.select %7, %5, %10 : vector<32x34xi1>, vector<32x34xf32>
    %12 = arith.truncf %11 : vector<32x34xf32> to vector<32x34xbf16>
    %c0_8 = arith.constant 0 : index
    %c0_9 = arith.constant 0 : index
    %13 = vector.load %arg5[%c0_8, %c0_9] : memref<32x34xbf16, #tpu.memory_space<vmem>>, vector<32x34xbf16>
    tpu.vector_store %arg5[%c0_8, %c0_9], %12 {strides = array<i32>} : memref<32x34xbf16, #tpu.memory_space<vmem>>, vector<32x34xbf16>,
    return
  }
  func.func @transform_0(%arg0: i32) -> (i32, i32) {
    %c0_i32 = arith.constant 0 : i32
    %c0_i32_0 = arith.constant 0 : i32
    return %arg0, %c0_i32 : i32, i32
  }
  func.func @transform_1(%arg0: i32) -> (i32, i32) {
    %c0_i32 = arith.constant 0 : i32
    %c0_i32_0 = arith.constant 0 : i32
    %c0_i32_1 = arith.constant 0 : i32
    return %c0_i32, %c0_i32_0 : i32, i32
  }
  func.func @transform_2(%arg0: i32) -> (i32, i32) {
    %c0_i32 = arith.constant 0 : i32
    %c0_i32_0 = arith.constant 0 : i32
    %c0_i32_1 = arith.constant 0 : i32
    return %c0_i32, %c0_i32_0 : i32, i32
  }
  func.func @transform_3(%arg0: i32) -> (i32, i32) {
    %c0_i32 = arith.constant 0 : i32
    %c0_i32_0 = arith.constant 0 : i32
    %c0_i32_1 = arith.constant 0 : i32
    return %c0_i32, %c0_i32_0 : i32, i32
  }
  func.func @transform_4(%arg0: i32) -> (i32, i32) {
    %c0_i32 = arith.constant 0 : i32
    %c0_i32_0 = arith.constant 0 : i32
    return %arg0, %c0_i32 : i32, i32
  }
}

</mosaic_0001>

<llo_original>
// kernel: flownet_forward.7
$region0: #{flownet_forward.7}
  #allocation0 [shape = 'u32[]', space=smem, size = 0x4, offset = 0x4, fixed_abs, tag = 'smem constant byte address 0x4 - core index']
  #allocation1 [shape = 'u32[72,128]{1,0:T(1,128)}', space=vmem, size = 0x9000, scoped, tag = 'internal scratch']
  %s0 = inlined_call_operand.vmem [shape: bf16[32,72], index: 0, kind: input, shape index: {}]
  %s1 = inlined_call_operand.vmem [shape: bf16[72,16], index: 1, kind: input, shape index: {}]
  %s2 = inlined_call_operand.vmem [shape: f32[1,16], index: 2, kind: input, shape index: {}]
  %s3 = inlined_call_operand.vmem [shape: f32[1,16], index: 3, kind: input, shape index: {}]
  %s4 = inlined_call_operand.vmem [shape: bf16[32,16], index: 4, kind: output, shape index: {}]
  %s5 = sld [smem:[#allocation0]]
  $region26: #{flownet_forward.7} parent=0
    _
  %s7 = ssub.s32 1, %s5
  %s8 = scalar_select 0, %s7, %s5
  // Predicated region
  $region2: #{flownet_forward.7} parent=0 // pred_check
    _
  $region3: #{flownet_forward.7} parent=0 // pred_check_branch
    %10 = sbr.rel (0) target = $region5
  $region4: #{flownet_forward.7} parent=0 // pred_region
    _
  $region5: #{flownet_forward.7} parent=0 // pred_fallthru
    _
  // Predicated region
  $region6: #{flownet_forward.7} parent=0 // pred_check
    _
  $region7: #{flownet_forward.7} parent=0 // pred_check_branch
    %12 = sbr.rel (0) target = $region9
  $region8: #{flownet_forward.7} parent=0 // pred_region
    _
  $region9: #{flownet_forward.7} parent=0 // pred_fallthru
    _
  // Predicated region
  $region10: #{flownet_forward.7} parent=0 // pred_check
    _
  $region11: #{flownet_forward.7} parent=0 // pred_check_branch
    %14 = sbr.rel (0) target = $region13
  $region12: #{flownet_forward.7} parent=0 // pred_region
    _
  $region13: #{flownet_forward.7} parent=0 // pred_fallthru
    _
  // Predicated region
  $region14: #{flownet_forward.7} parent=0 // pred_check
    _
  $region15: #{flownet_forward.7} parent=0 // pred_check_branch
    %16 = sbr.rel (0) target = $region17
  $region16: #{flownet_forward.7} parent=0 // pred_region
    _
  $region17: #{flownet_forward.7} parent=0 // pred_fallthru
    _
  %v18 = vld [vmem:[%s0] sm:$0xf]
  %v19 = vld [vmem:[%s0 + $0x4] sm:$0xf]
  %v20 = vld [vmem:[%s0 + $0x8] sm:$0xf]
  %v21 = vld [vmem:[%s0 + $0xc] sm:$0xf]
  %v22 = vld [vmem:[%s1] sm:$0xf]
  %v23 = vld [vmem:[%s1 + $0x4] sm:$0xf]
  %v24 = vld [vmem:[%s1 + $0x8] sm:$0xf]
  %v25 = vld [vmem:[%s1 + $0xc] sm:$0xf]
  %v26 = vld [vmem:[%s1 + $0x10] sm:$0xf]
  %v27 = vld [vmem:[%s1 + $0x14] sm:$0xf]
  %v28 = vld [vmem:[%s1 + $0x18] sm:$0xf]
  %v29 = vld [vmem:[%s1 + $0x1c] sm:$0xf]
  %v30 = vld [vmem:[%s1 + $0x20] sm:$0xf]
  %v31 = vld [vmem:[%s2] sm:$0x1]
  %v33 = vperm.slane %v31, 0
  %v39 = vunpack.c.l.b16 %v18
  %v40 = vunpack.c.l.b16 %v19
  %v41 = vunpack.c.l.b16 %v20
  %v42 = vunpack.c.l.b16 %v21
  %v43 = vpack.c.b16 %v40, %v39
  %v44 = vpack.c.b16 %v42, %v41
  %v54 = vunpack.c.l.b16 %v22
  %v55 = vunpack.c.l.b16 %v23
  %v56 = vunpack.c.l.b16 %v24
  %v57 = vunpack.c.l.b16 %v25
  %v58 = vunpack.c.l.b16 %v26
  %v59 = vunpack.c.l.b16 %v27
  %v60 = vunpack.c.l.b16 %v28
  %v61 = vunpack.c.l.b16 %v29
  %v62 = vunpack.c.l.b16 %v30
  %v63 = vpack.c.b16 %v55, %v54
  %v64 = vpack.c.b16 %v57, %v56
  %v65 = vpack.c.b16 %v59, %v58
  %v66 = vpack.c.b16 %v61, %v60
  %v67 = vpack.c.b16 %v62, %v62
  %vm72 = vcmask 588800
  %v74 = vsel %vm72, %v43, 0
  %v77 = vsel %vm72, %v44, 0
  %vm79 = vcmask 1043456
  %v81 = vsel %vm79, %v67, 0
  %83 = vmatpush.bf16.msra.mxu0 0
  %84 = vmatpush.bf16.msra.mxu0 0
  %85 = vmatpush.bf16.msra.mxu0 0
  %86 = vmatpush.bf16.msra.mxu0 %v81
  %87 = vmatpush.bf16.msra.mxu0 %v66
  %88 = vmatpush.bf16.msra.mxu0 %v65
  %89 = vmatpush.bf16.msra.mxu0 %v64
  %90 = vmatpush.bf16.msra.mxu0 %v63
  %91 = vmatmul.bf16.gmra.mxu0 %v74
  %v92 = vpop.f32.mrf.mxu0
  %v93 = vadd.f32 %v33, %v92
  %v94 = vpop.f32.mrf.mxu0
  %v95 = vadd.f32 %v33, %v94
  %96 = vmatmul.bf16.gmra.mxu0 %v77
  %v97 = vpop.f32.mrf.mxu0
  %v98 = vadd.f32 %v33, %v97
  %v99 = vpop.f32.mrf.mxu0
  %v100 = vadd.f32 %v33, %v99
  %101 = vdwg.mxu0
  %vm102 = vcmp.ge.f32.partialorder %v93, 0.0
  %vm103 = vcmp.ge.f32.partialorder %v95, 0.0
  %vm104 = vcmp.ge.f32.partialorder %v98, 0.0
  %vm105 = vcmp.ge.f32.partialorder %v100, 0.0
  %v106 = vld [vmem:[%s3] sm:$0x1]
  %v108 = vperm.slane %v106, 0
  %v110 = vmul.f32 %v93, %v108
  %v111 = vmul.f32 %v95, %v108
  %v112 = vmul.f32 %v98, %v108
  %v113 = vmul.f32 %v100, %v108
  %v114 = vsel %vm102, %v93, %v110
  %v115 = vsel %vm103, %v95, %v111
  %v116 = vsel %vm104, %v98, %v112
  %v117 = vsel %vm105, %v100, %v113
  %v118 = vpack.c.bf16 %v114, %v114
  %v119 = vpack.c.bf16 %v115, %v115
  %v120 = vpack.c.bf16 %v116, %v116
  %v121 = vpack.c.bf16 %v117, %v117
  %vm122 = vcmask 125952
  %123 = vst.msk [vmem:[%s4] sm:$0xf] %vm122, %v118
  %124 = vst.msk [vmem:[%s4 + $0x4] sm:$0xf] %vm122, %v119
  %125 = vst.msk [vmem:[%s4 + $0x8] sm:$0xf] %vm122, %v120
  %126 = vst.msk [vmem:[%s4 + $0xc] sm:$0xf] %vm122, %v121
  // Predicated region
  $region18: #{flownet_forward.7} parent=0 // pred_check
    _
  $region19: #{flownet_forward.7} parent=0 // pred_check_branch
    %128 = sbr.rel (0) target = $region21
  $region20: #{flownet_forward.7} parent=0 // pred_region
    _
  $region21: #{flownet_forward.7} parent=0 // pred_fallthru
    _
  // Predicated region
  $region22: #{flownet_forward.7} parent=0 // pred_check
    _
  $region23: #{flownet_forward.7} parent=0 // pred_check_branch
    %130 = sbr.rel (0) target = $region25
  $region24: #{flownet_forward.7} parent=0 // pred_region
    _
  $region25: #{flownet_forward.7} parent=0 // pred_fallthru
    _

// kernel: flownet_forward.6
$region0: #{flownet_forward.6}
  #allocation0 [shape = 'u32[]', space=smem, size = 0x4, offset = 0x4, fixed_abs, tag = 'smem constant byte address 0x4 - core index']
  #allocation1 [shape = 'u32[72,128]{1,0:T(1,128)}', space=vmem, size = 0x9000, scoped, tag = 'internal scratch']
  %s0 = inlined_call_operand.vmem [shape: bf16[128,54], index: 0, kind: input, shape index: {}]
  %s1 = inlined_call_operand.vmem [shape: bf16[54,8], index: 1, kind: input, shape index: {}]
  %s2 = inlined_call_operand.vmem [shape: f32[1,8], index: 2, kind: input, shape index: {}]
  %s3 = inlined_call_operand.vmem [shape: f32[1,8], index: 3, kind: input, shape index: {}]
  %s4 = inlined_call_operand.vmem [shape: bf16[128,8], index: 4, kind: output, shape index: {}]
  %s5 = sld [smem:[#allocation0]]
  $region26: #{flownet_forward.6} parent=0
    _
  %s7 = ssub.s32 1, %s5
  %s8 = scalar_select 0, %s7, %s5
  // Predicated region
  $region2: #{flownet_forward.6} parent=0 // pred_check
    _
  $region3: #{flownet_forward.6} parent=0 // pred_check_branch
    %10 = sbr.rel (0) target = $region5
  $region4: #{flownet_forward.6} parent=0 // pred_region
    _
  $region5: #{flownet_forward.6} parent=0 // pred_fallthru
    _
  // Predicated region
  $region6: #{flownet_forward.6} parent=0 // pred_check
    _
  $region7: #{flownet_forward.6} parent=0 // pred_check_branch
    %12 = sbr.rel (0) target = $region9
  $region8: #{flownet_forward.6} parent=0 // pred_region
    _
  $region9: #{flownet_forward.6} parent=0 // pred_fallthru
    _
  // Predicated region
  $region10: #{flownet_forward.6} parent=0 // pred_check
    _
  $region11: #{flownet_forward.6} parent=0 // pred_check_branch
    %14 = sbr.rel (0) target = $region13
  $region12: #{flownet_forward.6} parent=0 // pred_region
    _
  $region13: #{flownet_forward.6} parent=0 // pred_fallthru
    _
  // Predicated region
  $region14: #{flownet_forward.6} parent=0 // pred_check
    _
  $region15: #{flownet_forward.6} parent=0 // pred_check_branch
    %16 = sbr.rel (0) target = $region17
  $region16: #{flownet_forward.6} parent=0 // pred_region
    _
  $region17: #{flownet_forward.6} parent=0 // pred_fallthru
    _
  %v18 = vld [vmem:[%s0] sm:$0xf]
  %v19 = vld [vmem:[%s0 + $0x4] sm:$0xf]
  %v20 = vld [vmem:[%s0 + $0x8] sm:$0xf]
  %v21 = vld [vmem:[%s0 + $0xc] sm:$0xf]
  %v22 = vld [vmem:[%s0 + $0x10] sm:$0xf]
  %v23 = vld [vmem:[%s0 + $0x14] sm:$0xf]
  %v24 = vld [vmem:[%s0 + $0x18] sm:$0xf]
  %v25 = vld [vmem:[%s0 + $0x1c] sm:$0xf]
  %v26 = vld [vmem:[%s0 + $0x20] sm:$0xf]
  %v27 = vld [vmem:[%s0 + $0x24] sm:$0xf]
  %v28 = vld [vmem:[%s0 + $0x28] sm:$0xf]
  %v29 = vld [vmem:[%s0 + $0x2c] sm:$0xf]
  %v30 = vld [vmem:[%s0 + $0x30] sm:$0xf]
  %v31 = vld [vmem:[%s0 + $0x34] sm:$0xf]
  %v32 = vld [vmem:[%s0 + $0x38] sm:$0xf]
  %v33 = vld [vmem:[%s0 + $0x3c] sm:$0xf]
  %v34 = vld [vmem:[%s1] sm:$0xf]
  %v35 = vld [vmem:[%s1 + $0x4] sm:$0xf]
  %v36 = vld [vmem:[%s1 + $0x8] sm:$0xf]
  %v37 = vld [vmem:[%s1 + $0xc] sm:$0xf]
  %v38 = vld [vmem:[%s1 + $0x10] sm:$0xf]
  %v39 = vld [vmem:[%s1 + $0x14] sm:$0xf]
  %v40 = vld [vmem:[%s1 + $0x18] sm:$0x7]
  %v41 = vld [vmem:[%s2] sm:$0x1]
  %v43 = vperm.slane %v41, 0
  %v61 = vunpack.c.l.b16 %v18
  %v62 = vunpack.c.l.b16 %v19
  %v63 = vunpack.c.l.b16 %v20
  %v64 = vunpack.c.l.b16 %v21
  %v65 = vunpack.c.l.b16 %v22
  %v66 = vunpack.c.l.b16 %v23
  %v67 = vunpack.c.l.b16 %v24
  %v68 = vunpack.c.l.b16 %v25
  %v69 = vunpack.c.l.b16 %v26
  %v70 = vunpack.c.l.b16 %v27
  %v71 = vunpack.c.l.b16 %v28
  %v72 = vunpack.c.l.b16 %v29
  %v73 = vunpack.c.l.b16 %v30
  %v74 = vunpack.c.l.b16 %v31
  %v75 = vunpack.c.l.b16 %v32
  %v76 = vunpack.c.l.b16 %v33
  %v77 = vpack.c.b16 %v62, %v61
  %v78 = vpack.c.b16 %v64, %v63
  %v79 = vpack.c.b16 %v66, %v65
  %v80 = vpack.c.b16 %v68, %v67
  %v81 = vpack.c.b16 %v70, %v69
  %v82 = vpack.c.b16 %v72, %v71
  %v83 = vpack.c.b16 %v74, %v73
  %v84 = vpack.c.b16 %v76, %v75
  %v92 = vunpack.c.l.b16 %v34
  %v93 = vunpack.c.l.b16 %v35
  %v94 = vunpack.c.l.b16 %v36
  %v95 = vunpack.c.l.b16 %v37
  %v96 = vunpack.c.l.b16 %v38
  %v97 = vunpack.c.l.b16 %v39
  %v98 = vunpack.c.l.b16 %v40
  %v99 = vpack.c.b16 %v93, %v92
  %v100 = vpack.c.b16 %v95, %v94
  %v101 = vpack.c.b16 %v97, %v96
  %v102 = vpack.c.b16 %v98, %v98
  %vm106 = vcmask 441344
  %v108 = vsel %vm106, %v77, 0
  %v111 = vsel %vm106, %v78, 0
  %v114 = vsel %vm106, %v79, 0
  %v117 = vsel %vm106, %v80, 0
  %v120 = vsel %vm106, %v81, 0
  %v123 = vsel %vm106, %v82, 0
  %v126 = vsel %vm106, %v83, 0
  %v129 = vsel %vm106, %v84, 0
  %vm131 = vcmask 1042432
  %v133 = vsel %vm131, %v102, 0
  %135 = vmatpush.bf16.msra.mxu0 0
  %136 = vmatpush.bf16.msra.mxu0 0
  %137 = vmatpush.bf16.msra.mxu0 0
  %138 = vmatpush.bf16.msra.mxu0 0
  %139 = vmatpush.bf16.msra.mxu0 %v133
  %140 = vmatpush.bf16.msra.mxu0 %v101
  %141 = vmatpush.bf16.msra.mxu0 %v100
  %142 = vmatpush.bf16.msra.mxu0 %v99
  %143 = vmatmul.bf16.gmra.mxu0 %v108
  %v144 = vpop.f32.mrf.mxu0
  %v145 = vadd.f32 %v43, %v144
  %v146 = vpop.f32.mrf.mxu0
  %v147 = vadd.f32 %v43, %v146
  %148 = vmatmul.bf16.gmra.mxu0 %v111
  %v149 = vpop.f32.mrf.mxu0
  %v150 = vadd.f32 %v43, %v149
  %v151 = vpop.f32.mrf.mxu0
  %v152 = vadd.f32 %v43, %v151
  %153 = vmatmul.bf16.gmra.mxu0 %v114
  %v154 = vpop.f32.mrf.mxu0
  %v155 = vadd.f32 %v43, %v154
  %v156 = vpop.f32.mrf.mxu0
  %v157 = vadd.f32 %v43, %v156
  %158 = vmatmul.bf16.gmra.mxu0 %v117
  %v159 = vpop.f32.mrf.mxu0
  %v160 = vadd.f32 %v43, %v159
  %v161 = vpop.f32.mrf.mxu0
  %v162 = vadd.f32 %v43, %v161
  %163 = vmatmul.bf16.gmra.mxu0 %v120
  %v164 = vpop.f32.mrf.mxu0
  %v165 = vadd.f32 %v43, %v164
  %v166 = vpop.f32.mrf.mxu0
  %v167 = vadd.f32 %v43, %v166
  %168 = vmatmul.bf16.gmra.mxu0 %v123
  %v169 = vpop.f32.mrf.mxu0
  %v170 = vadd.f32 %v43, %v169
  %v171 = vpop.f32.mrf.mxu0
  %v172 = vadd.f32 %v43, %v171
  %173 = vmatmul.bf16.gmra.mxu0 %v126
  %v174 = vpop.f32.mrf.mxu0
  %v175 = vadd.f32 %v43, %v174
  %v176 = vpop.f32.mrf.mxu0
  %v177 = vadd.f32 %v43, %v176
  %178 = vmatmul.bf16.gmra.mxu0 %v129
  %v179 = vpop.f32.mrf.mxu0
  %v180 = vadd.f32 %v43, %v179
  %v181 = vpop.f32.mrf.mxu0
  %v182 = vadd.f32 %v43, %v181
  %183 = vdwg.mxu0
  %vm184 = vcmp.ge.f32.partialorder %v145, 0.0
  %vm185 = vcmp.ge.f32.partialorder %v147, 0.0
  %vm186 = vcmp.ge.f32.partialorder %v150, 0.0
  %vm187 = vcmp.ge.f32.partialorder %v152, 0.0
  %vm188 = vcmp.ge.f32.partialorder %v155, 0.0
  %vm189 = vcmp.ge.f32.partialorder %v157, 0.0
  %vm190 = vcmp.ge.f32.partialorder %v160, 0.0
  %vm191 = vcmp.ge.f32.partialorder %v162, 0.0
  %vm192 = vcmp.ge.f32.partialorder %v165, 0.0
  %vm193 = vcmp.ge.f32.partialorder %v167, 0.0
  %vm194 = vcmp.ge.f32.partialorder %v170, 0.0
  %vm195 = vcmp.ge.f32.partialorder %v172, 0.0
  %vm196 = vcmp.ge.f32.partialorder %v175, 0.0
  %vm197 = vcmp.ge.f32.partialorder %v177, 0.0
  %vm198 = vcmp.ge.f32.partialorder %v180, 0.0
  %vm199 = vcmp.ge.f32.partialorder %v182, 0.0
  %v200 = vld [vmem:[%s3] sm:$0x1]
  %v202 = vperm.slane %v200, 0
  %v204 = vmul.f32 %v145, %v202
  %v205 = vmul.f32 %v147, %v202
  %v206 = vmul.f32 %v150, %v202
  %v207 = vmul.f32 %v152, %v202
  %v208 = vmul.f32 %v155, %v202
  %v209 = vmul.f32 %v157, %v202
  %v210 = vmul.f32 %v160, %v202
  %v211 = vmul.f32 %v162, %v202
  %v212 = vmul.f32 %v165, %v202
  %v213 = vmul.f32 %v167, %v202
  %v214 = vmul.f32 %v170, %v202
  %v215 = vmul.f32 %v172, %v202
  %v216 = vmul.f32 %v175, %v202
  %v217 = vmul.f32 %v177, %v202
  %v218 = vmul.f32 %v180, %v202
  %v219 = vmul.f32 %v182, %v202
  %v220 = vsel %vm184, %v145, %v204
  %v221 = vsel %vm185, %v147, %v205
  %v222 = vsel %vm186, %v150, %v206
  %v223 = vsel %vm187, %v152, %v207
  %v224 = vsel %vm188, %v155, %v208
  %v225 = vsel %vm189, %v157, %v209
  %v226 = vsel %vm190, %v160, %v210
  %v227 = vsel %vm191, %v162, %v211
  %v228 = vsel %vm192, %v165, %v212
  %v229 = vsel %vm193, %v167, %v213
  %v230 = vsel %vm194, %v170, %v214
  %v231 = vsel %vm195, %v172, %v215
  %v232 = vsel %vm196, %v175, %v216
  %v233 = vsel %vm197, %v177, %v217
  %v234 = vsel %vm198, %v180, %v218
  %v235 = vsel %vm199, %v182, %v219
  %v236 = vpack.c.bf16 %v220, %v220
  %v237 = vpack.c.bf16 %v221, %v221
  %v238 = vpack.c.bf16 %v222, %v222
  %v239 = vpack.c.bf16 %v223, %v223
  %v240 = vpack.c.bf16 %v224, %v224
  %v241 = vpack.c.bf16 %v225, %v225
  %v242 = vpack.c.bf16 %v226, %v226
  %v243 = vpack.c.bf16 %v227, %v227
  %v244 = vpack.c.bf16 %v228, %v228
  %v245 = vpack.c.bf16 %v229, %v229
  %v246 = vpack.c.bf16 %v230, %v230
  %v247 = vpack.c.bf16 %v231, %v231
  %v248 = vpack.c.bf16 %v232, %v232
  %v249 = vpack.c.bf16 %v233, %v233
  %v250 = vpack.c.bf16 %v234, %v234
  %v251 = vpack.c.bf16 %v235, %v235
  %vm252 = vcmask 60416
  %253 = vst.msk [vmem:[%s4] sm:$0xf] %vm252, %v236
  %254 = vst.msk [vmem:[%s4 + $0x4] sm:$0xf] %vm252, %v237
  %255 = vst.msk [vmem:[%s4 + $0x8] sm:$0xf] %vm252, %v238
  %256 = vst.msk [vmem:[%s4 + $0xc] sm:$0xf] %vm252, %v239
  %257 = vst.msk [vmem:[%s4 + $0x10] sm:$0xf] %vm252, %v240
  %258 = vst.msk [vmem:[%s4 + $0x14] sm:$0xf] %vm252, %v241
  %259 = vst.msk [vmem:[%s4 + $0x18] sm:$0xf] %vm252, %v242
  %260 = vst.msk [vmem:[%s4 + $0x1c] sm:$0xf] %vm252, %v243
  %261 = vst.msk [vmem:[%s4 + $0x20] sm:$0xf] %vm252, %v244
  %262 = vst.msk [vmem:[%s4 + $0x24] sm:$0xf] %vm252, %v245
  %263 = vst.msk [vmem:[%s4 + $0x28] sm:$0xf] %vm252, %v246
  %264 = vst.msk [vmem:[%s4 + $0x2c] sm:$0xf] %vm252, %v247
  %265 = vst.msk [vmem:[%s4 + $0x30] sm:$0xf] %vm252, %v248
  %266 = vst.msk [vmem:[%s4 + $0x34] sm:$0xf] %vm252, %v249
  %267 = vst.msk [vmem:[%s4 + $0x38] sm:$0xf] %vm252, %v250
  %268 = vst.msk [vmem:[%s4 + $0x3c] sm:$0xf] %vm252, %v251
  // Predicated region
  $region18: #{flownet_forward.6} parent=0 // pred_check
    _
  $region19: #{flownet_forward.6} parent=0 // pred_check_branch
    %270 = sbr.rel (0) target = $region21
  $region20: #{flownet_forward.6} parent=0 // pred_region
    _
  $region21: #{flownet_forward.6} parent=0 // pred_fallthru
    _
  // Predicated region
  $region22: #{flownet_forward.6} parent=0 // pred_check
    _
  $region23: #{flownet_forward.6} parent=0 // pred_check_branch
    %272 = sbr.rel (0) target = $region25
  $region24: #{flownet_forward.6} parent=0 // pred_region
    _
  $region25: #{flownet_forward.6} parent=0 // pred_fallthru
    _

// kernel: flownet_forward.8
$region0: #{flownet_forward.8}
  #allocation0 [shape = 'u32[]', space=smem, size = 0x4, offset = 0x4, fixed_abs, tag = 'smem constant byte address 0x4 - core index']
  #allocation1 [shape = 'u32[72,128]{1,0:T(1,128)}', space=vmem, size = 0x9000, scoped, tag = 'internal scratch']
  %s0 = inlined_call_operand.vmem [shape: bf16[8,144], index: 0, kind: input, shape index: {}]
  %s1 = inlined_call_operand.vmem [shape: bf16[144,32], index: 1, kind: input, shape index: {}]
  %s2 = inlined_call_operand.vmem [shape: f32[1,32], index: 2, kind: input, shape index: {}]
  %s3 = inlined_call_operand.vmem [shape: f32[1,32], index: 3, kind: input, shape index: {}]
  %s4 = inlined_call_operand.vmem [shape: bf16[8,32], index: 4, kind: output, shape index: {}]
  %s5 = sld [smem:[#allocation0]]
  $region26: #{flownet_forward.8} parent=0
    _
  %s7 = ssub.s32 1, %s5
  %s8 = scalar_select 0, %s7, %s5
  // Predicated region
  $region2: #{flownet_forward.8} parent=0 // pred_check
    _
  $region3: #{flownet_forward.8} parent=0 // pred_check_branch
    %10 = sbr.rel (0) target = $region5
  $region4: #{flownet_forward.8} parent=0 // pred_region
    _
  $region5: #{flownet_forward.8} parent=0 // pred_fallthru
    _
  // Predicated region
  $region6: #{flownet_forward.8} parent=0 // pred_check
    _
  $region7: #{flownet_forward.8} parent=0 // pred_check_branch
    %12 = sbr.rel (0) target = $region9
  $region8: #{flownet_forward.8} parent=0 // pred_region
    _
  $region9: #{flownet_forward.8} parent=0 // pred_fallthru
    _
  // Predicated region
  $region10: #{flownet_forward.8} parent=0 // pred_check
    _
  $region11: #{flownet_forward.8} parent=0 // pred_check_branch
    %14 = sbr.rel (0) target = $region13
  $region12: #{flownet_forward.8} parent=0 // pred_region
    _
  $region13: #{flownet_forward.8} parent=0 // pred_fallthru
    _
  // Predicated region
  $region14: #{flownet_forward.8} parent=0 // pred_check
    _
  $region15: #{flownet_forward.8} parent=0 // pred_check_branch
    %16 = sbr.rel (0) target = $region17
  $region16: #{flownet_forward.8} parent=0 // pred_region
    _
  $region17: #{flownet_forward.8} parent=0 // pred_fallthru
    _
  %v18 = vld [vmem:[%s0] sm:$0xff]
  %v19 = vld [vmem:[%s1] sm:$0xf]
  %v20 = vld [vmem:[%s1 + $0x4] sm:$0xf]
  %v21 = vld [vmem:[%s1 + $0x8] sm:$0xf]
  %v22 = vld [vmem:[%s1 + $0xc] sm:$0xf]
  %v23 = vld [vmem:[%s1 + $0x10] sm:$0xf]
  %v24 = vld [vmem:[%s1 + $0x14] sm:$0xf]
  %v25 = vld [vmem:[%s1 + $0x18] sm:$0xf]
  %v26 = vld [vmem:[%s1 + $0x1c] sm:$0xf]
  %v27 = vld [vmem:[%s1 + $0x20] sm:$0xf]
  %v28 = vld [vmem:[%s1 + $0x24] sm:$0xf]
  %v29 = vld [vmem:[%s1 + $0x28] sm:$0xf]
  %v30 = vld [vmem:[%s1 + $0x2c] sm:$0xf]
  %v31 = vld [vmem:[%s1 + $0x30] sm:$0xf]
  %v32 = vld [vmem:[%s1 + $0x34] sm:$0xf]
  %v33 = vld [vmem:[%s1 + $0x38] sm:$0xf]
  %v34 = vld [vmem:[%s1 + $0x3c] sm:$0xf]
  %v35 = vld [vmem:[%s1 + $0x40] sm:$0xf]
  %v36 = vld [vmem:[%s1 + $0x44] sm:$0xf]
  %v37 = vld [vmem:[%s2] sm:$0x1]
  %v39 = vperm.slane %v37, 0
  %v42 = vunpack.c.l.b16 %v18
  %v43 = vunpack.c.h.b16 %v18
  %v44 = vpack.c.b16 %v42, %v42
  %v45 = vpack.c.b16 %v43, %v43
  %v65 = vunpack.c.l.b16 %v19
  %v66 = vunpack.c.l.b16 %v20
  %v67 = vunpack.c.l.b16 %v21
  %v68 = vunpack.c.l.b16 %v22
  %v69 = vunpack.c.l.b16 %v23
  %v70 = vunpack.c.l.b16 %v24
  %v71 = vunpack.c.l.b16 %v25
  %v72 = vunpack.c.l.b16 %v26
  %v73 = vunpack.c.l.b16 %v27
  %v74 = vunpack.c.l.b16 %v28
  %v75 = vunpack.c.l.b16 %v29
  %v76 = vunpack.c.l.b16 %v30
  %v77 = vunpack.c.l.b16 %v31
  %v78 = vunpack.c.l.b16 %v32
  %v79 = vunpack.c.l.b16 %v33
  %v80 = vunpack.c.l.b16 %v34
  %v81 = vunpack.c.l.b16 %v35
  %v82 = vunpack.c.l.b16 %v36
  %v83 = vpack.c.b16 %v66, %v65
  %v84 = vpack.c.b16 %v68, %v67
  %v85 = vpack.c.b16 %v70, %v69
  %v86 = vpack.c.b16 %v72, %v71
  %v87 = vpack.c.b16 %v74, %v73
  %v88 = vpack.c.b16 %v76, %v75
  %v89 = vpack.c.b16 %v78, %v77
  %v90 = vpack.c.b16 %v80, %v79
  %v91 = vpack.c.b16 %v82, %v81
  %vm101 = vcmask 130048
  %v103 = vsel %vm101, %v45, 0
  %105 = vmatpush.bf16.msra.mxu0 %v90
  %106 = vmatpush.bf16.msra.mxu0 %v89
  %107 = vmatpush.bf16.msra.mxu0 %v88
  %108 = vmatpush.bf16.msra.mxu0 %v87
  %109 = vmatpush.bf16.msra.mxu0 %v86
  %110 = vmatpush.bf16.msra.mxu0 %v85
  %111 = vmatpush.bf16.msra.mxu0 %v84
  %112 = vmatpush.bf16.msra.mxu0 %v83
  %113 = vmatmul.bf16.gmra.mxu0 %v44
  %v114 = vpop.f32.mrf.mxu0
  %v115 = vadd.f32 %v39, %v114
  %v116 = vpop.f32.mrf.mxu0
  %117 = vdwg.mxu0
  %118 = vmatpush.bf16.msra.mxu0 0
  %119 = vmatpush.bf16.msra.mxu0 0
  %120 = vmatpush.bf16.msra.mxu0 0
  %121 = vmatpush.bf16.msra.mxu0 0
  %122 = vmatpush.bf16.msra.mxu0 0
  %123 = vmatpush.bf16.msra.mxu0 0
  %124 = vmatpush.bf16.msra.mxu0 0
  %125 = vmatpush.bf16.msra.mxu0 %v91
  %126 = vmatmul.bf16.gmra.mxu0 %v103
  %v127 = vpop.f32.mrf.mxu0
  %v128 = vadd.f32 %v115, %v127
  %v129 = vpop.f32.mrf.mxu0
  %130 = vdwg.mxu0
  %vm131 = vcmp.ge.f32.partialorder %v128, 0.0
  %v132 = vld [vmem:[%s3] sm:$0x1]
  %v134 = vperm.slane %v132, 0
  %v136 = vmul.f32 %v128, %v134
  %v137 = vsel %vm131, %v128, %v136
  %v138 = vpack.c.bf16 %v137, %v137
  %vm139 = vcmask 257024
  %140 = vst.msk [vmem:[%s4] sm:$0xf] %vm139, %v138
  // Predicated region
  $region18: #{flownet_forward.8} parent=0 // pred_check
    _
  $region19: #{flownet_forward.8} parent=0 // pred_check_branch
    %142 = sbr.rel (0) target = $region21
  $region20: #{flownet_forward.8} parent=0 // pred_region
    _
  $region21: #{flownet_forward.8} parent=0 // pred_fallthru
    _
  // Predicated region
  $region22: #{flownet_forward.8} parent=0 // pred_check
    _
  $region23: #{flownet_forward.8} parent=0 // pred_check_branch
    %144 = sbr.rel (0) target = $region25
  $region24: #{flownet_forward.8} parent=0 // pred_region
    _
  $region25: #{flownet_forward.8} parent=0 // pred_fallthru
    _

// kernel: flownet_forward.9
$region0: #{flownet_forward.9}
  #allocation0 [shape = 'u32[]', space=smem, size = 0x4, offset = 0x4, fixed_abs, tag = 'smem constant byte address 0x4 - core index']
  #allocation1 [shape = 'u32[72,128]{1,0:T(1,128)}', space=vmem, size = 0x9000, scoped, tag = 'internal scratch']
  %s0 = inlined_call_operand.vmem [shape: bf16[8,288], index: 0, kind: input, shape index: {}]
  %s1 = inlined_call_operand.vmem [shape: bf16[288,34], index: 1, kind: input, shape index: {}]
  %s2 = inlined_call_operand.vmem [shape: f32[1,34], index: 2, kind: input, shape index: {}]
  %s3 = inlined_call_operand.vmem [shape: f32[1,34], index: 3, kind: input, shape index: {}]
  %s4 = inlined_call_operand.vmem [shape: bf16[8,34], index: 4, kind: output, shape index: {}]
  %s5 = sld [smem:[#allocation0]]
  $region26: #{flownet_forward.9} parent=0
    _
  %s7 = ssub.s32 1, %s5
  %s8 = scalar_select 0, %s7, %s5
  // Predicated region
  $region2: #{flownet_forward.9} parent=0 // pred_check
    _
  $region3: #{flownet_forward.9} parent=0 // pred_check_branch
    %10 = sbr.rel (0) target = $region5
  $region4: #{flownet_forward.9} parent=0 // pred_region
    _
  $region5: #{flownet_forward.9} parent=0 // pred_fallthru
    _
  // Predicated region
  $region6: #{flownet_forward.9} parent=0 // pred_check
    _
  $region7: #{flownet_forward.9} parent=0 // pred_check_branch
    %12 = sbr.rel (0) target = $region9
  $region8: #{flownet_forward.9} parent=0 // pred_region
    _
  $region9: #{flownet_forward.9} parent=0 // pred_fallthru
    _
  // Predicated region
  $region10: #{flownet_forward.9} parent=0 // pred_check
    _
  $region11: #{flownet_forward.9} parent=0 // pred_check_branch
    %14 = sbr.rel (0) target = $region13
  $region12: #{flownet_forward.9} parent=0 // pred_region
    _
  $region13: #{flownet_forward.9} parent=0 // pred_fallthru
    _
  // Predicated region
  $region14: #{flownet_forward.9} parent=0 // pred_check
    _
  $region15: #{flownet_forward.9} parent=0 // pred_check_branch
    %16 = sbr.rel (0) target = $region17
  $region16: #{flownet_forward.9} parent=0 // pred_region
    _
  $region17: #{flownet_forward.9} parent=0 // pred_fallthru
    _
  %v18 = vld [vmem:[%s0] sm:$0xff]
  %v19 = vld [vmem:[%s0 + $0x8] sm:$0xf]
  %v20 = vld [vmem:[%s1] sm:$0xf]
  %v21 = vld [vmem:[%s1 + $0x4] sm:$0xf]
  %v22 = vld [vmem:[%s1 + $0x8] sm:$0xf]
  %v23 = vld [vmem:[%s1 + $0xc] sm:$0xf]
  %v24 = vld [vmem:[%s1 + $0x10] sm:$0xf]
  %v25 = vld [vmem:[%s1 + $0x14] sm:$0xf]
  %v26 = vld [vmem:[%s1 + $0x18] sm:$0xf]
  %v27 = vld [vmem:[%s1 + $0x1c] sm:$0xf]
  %v28 = vld [vmem:[%s1 + $0x20] sm:$0xf]
  %v29 = vld [vmem:[%s1 + $0x24] sm:$0xf]
  %v30 = vld [vmem:[%s1 + $0x28] sm:$0xf]
  %v31 = vld [vmem:[%s1 + $0x2c] sm:$0xf]
  %v32 = vld [vmem:[%s1 + $0x30] sm:$0xf]
  %v33 = vld [vmem:[%s1 + $0x34] sm:$0xf]
  %v34 = vld [vmem:[%s1 + $0x38] sm:$0xf]
  %v35 = vld [vmem:[%s1 + $0x3c] sm:$0xf]
  %v36 = vld [vmem:[%s1 + $0x40] sm:$0xf]
  %v37 = vld [vmem:[%s1 + $0x44] sm:$0xf]
  %v38 = vld [vmem:[%s1 + $0x48] sm:$0xf]
  %v39 = vld [vmem:[%s1 + $0x4c] sm:$0xf]
  %v40 = vld [vmem:[%s1 + $0x50] sm:$0xf]
  %v41 = vld [vmem:[%s1 + $0x54] sm:$0xf]
  %v42 = vld [vmem:[%s1 + $0x58] sm:$0xf]
  %v43 = vld [vmem:[%s1 + $0x5c] sm:$0xf]
  %v44 = vld [vmem:[%s1 + $0x60] sm:$0xf]
  %v45 = vld [vmem:[%s1 + $0x64] sm:$0xf]
  %v46 = vld [vmem:[%s1 + $0x68] sm:$0xf]
  %v47 = vld [vmem:[%s1 + $0x6c] sm:$0xf]
  %v48 = vld [vmem:[%s1 + $0x70] sm:$0xf]
  %v49 = vld [vmem:[%s1 + $0x74] sm:$0xf]
  %v50 = vld [vmem:[%s1 + $0x78] sm:$0xf]
  %v51 = vld [vmem:[%s1 + $0x7c] sm:$0xf]
  %v52 = vld [vmem:[%s1 + $0x80] sm:$0xf]
  %v53 = vld [vmem:[%s1 + $0x84] sm:$0xf]
  %v54 = vld [vmem:[%s1 + $0x88] sm:$0xf]
  %v55 = vld [vmem:[%s1 + $0x8c] sm:$0xf]
  %v56 = vld [vmem:[%s2] sm:$0x1]
  %v58 = vperm.slane %v56, 0
  %v62 = vunpack.c.l.b16 %v18
  %v63 = vunpack.c.h.b16 %v18
  %v64 = vunpack.c.l.b16 %v19
  %v65 = vpack.c.b16 %v62, %v62
  %v66 = vpack.c.b16 %v63, %v63
  %v67 = vpack.c.b16 %v64, %v64
  %v106 = vunpack.c.l.b16 %v20
  %v107 = vunpack.c.l.b16 %v21
  %v108 = vunpack.c.l.b16 %v22
  %v109 = vunpack.c.l.b16 %v23
  %v110 = vunpack.c.l.b16 %v24
  %v111 = vunpack.c.l.b16 %v25
  %v112 = vunpack.c.l.b16 %v26
  %v113 = vunpack.c.l.b16 %v27
  %v114 = vunpack.c.l.b16 %v28
  %v115 = vunpack.c.l.b16 %v29
  %v116 = vunpack.c.l.b16 %v30
  %v117 = vunpack.c.l.b16 %v31
  %v118 = vunpack.c.l.b16 %v32
  %v119 = vunpack.c.l.b16 %v33
  %v120 = vunpack.c.l.b16 %v34
  %v121 = vunpack.c.l.b16 %v35
  %v122 = vunpack.c.l.b16 %v36
  %v123 = vunpack.c.l.b16 %v37
  %v124 = vunpack.c.l.b16 %v38
  %v125 = vunpack.c.l.b16 %v39
  %v126 = vunpack.c.l.b16 %v40
  %v127 = vunpack.c.l.b16 %v41
  %v128 = vunpack.c.l.b16 %v42
  %v129 = vunpack.c.l.b16 %v43
  %v130 = vunpack.c.l.b16 %v44
  %v131 = vunpack.c.l.b16 %v45
  %v132 = vunpack.c.l.b16 %v46
  %v133 = vunpack.c.l.b16 %v47
  %v134 = vunpack.c.l.b16 %v48
  %v135 = vunpack.c.l.b16 %v49
  %v136 = vunpack.c.l.b16 %v50
  %v137 = vunpack.c.l.b16 %v51
  %v138 = vunpack.c.l.b16 %v52
  %v139 = vunpack.c.l.b16 %v53
  %v140 = vunpack.c.l.b16 %v54
  %v141 = vunpack.c.l.b16 %v55
  %v142 = vpack.c.b16 %v107, %v106
  %v143 = vpack.c.b16 %v109, %v108
  %v144 = vpack.c.b16 %v111, %v110
  %v145 = vpack.c.b16 %v113, %v112
  %v146 = vpack.c.b16 %v115, %v114
  %v147 = vpack.c.b16 %v117, %v116
  %v148 = vpack.c.b16 %v119, %v118
  %v149 = vpack.c.b16 %v121, %v120
  %v150 = vpack.c.b16 %v123, %v122
  %v151 = vpack.c.b16 %v125, %v124
  %v152 = vpack.c.b16 %v127, %v126
  %v153 = vpack.c.b16 %v129, %v128
  %v154 = vpack.c.b16 %v131, %v130
  %v155 = vpack.c.b16 %v133, %v132
  %v156 = vpack.c.b16 %v135, %v134
  %v157 = vpack.c.b16 %v137, %v136
  %v158 = vpack.c.b16 %v139, %v138
  %v159 = vpack.c.b16 %v141, %v140
  %vm178 = vcmask 261120
  %v180 = vsel %vm178, %v67, 0
  %182 = vmatpush.bf16.msra.mxu0 %v149
  %183 = vmatpush.bf16.msra.mxu0 %v148
  %184 = vmatpush.bf16.msra.mxu0 %v147
  %185 = vmatpush.bf16.msra.mxu0 %v146
  %186 = vmatpush.bf16.msra.mxu0 %v145
  %187 = vmatpush.bf16.msra.mxu0 %v144
  %188 = vmatpush.bf16.msra.mxu0 %v143
  %189 = vmatpush.bf16.msra.mxu0 %v142
  %190 = vmatmul.bf16.gmra.mxu0 %v65
  %v191 = vpop.f32.mrf.mxu0
  %v192 = vadd.f32 %v58, %v191
  %v193 = vpop.f32.mrf.mxu0
  %194 = vdwg.mxu0
  %195 = vmatpush.bf16.msra.mxu0 %v157
  %196 = vmatpush.bf16.msra.mxu0 %v156
  %197 = vmatpush.bf16.msra.mxu0 %v155
  %198 = vmatpush.bf16.msra.mxu0 %v154
  %199 = vmatpush.bf16.msra.mxu0 %v153
  %200 = vmatpush.bf16.msra.mxu0 %v152
  %201 = vmatpush.bf16.msra.mxu0 %v151
  %202 = vmatpush.bf16.msra.mxu0 %v150
  %203 = vmatmul.bf16.gmra.mxu0 %v66
  %v204 = vpop.f32.mrf.mxu0
  %v205 = vadd.f32 %v192, %v204
  %v206 = vpop.f32.mrf.mxu0
  %207 = vdwg.mxu0
  %208 = vmatpush.bf16.msra.mxu0 0
  %209 = vmatpush.bf16.msra.mxu0 0
  %210 = vmatpush.bf16.msra.mxu0 0
  %211 = vmatpush.bf16.msra.mxu0 0
  %212 = vmatpush.bf16.msra.mxu0 0
  %213 = vmatpush.bf16.msra.mxu0 0
  %214 = vmatpush.bf16.msra.mxu0 %v159
  %215 = vmatpush.bf16.msra.mxu0 %v158
  %216 = vmatmul.bf16.gmra.mxu0 %v180
  %v217 = vpop.f32.mrf.mxu0
  %v218 = vadd.f32 %v205, %v217
  %v219 = vpop.f32.mrf.mxu0
  %220 = vdwg.mxu0
  %vm221 = vcmp.ge.f32.partialorder %v218, 0.0
  %v222 = vld [vmem:[%s3] sm:$0x1]
  %v224 = vperm.slane %v222, 0
  %v226 = vmul.f32 %v218, %v224
  %v227 = vsel %vm221, %v218, %v226
  %v228 = vpack.c.bf16 %v227, %v227
  %vm229 = vcmask 273408
  %230 = vst.msk [vmem:[%s4] sm:$0xf] %vm229, %v228
  // Predicated region
  $region18: #{flownet_forward.9} parent=0 // pred_check
    _
  $region19: #{flownet_forward.9} parent=0 // pred_check_branch
    %232 = sbr.rel (0) target = $region21
  $region20: #{flownet_forward.9} parent=0 // pred_region
    _
  $region21: #{flownet_forward.9} parent=0 // pred_fallthru
    _
  // Predicated region
  $region22: #{flownet_forward.9} parent=0 // pred_check
    _
  $region23: #{flownet_forward.9} parent=0 // pred_check_branch
    %234 = sbr.rel (0) target = $region25
  $region24: #{flownet_forward.9} parent=0 // pred_region
    _
  $region25: #{flownet_forward.9} parent=0 // pred_fallthru
    _

// kernel: flownet_forward.10
$region0: #{flownet_forward.10}
  #allocation0 [shape = 'u32[]', space=smem, size = 0x4, offset = 0x4, fixed_abs, tag = 'smem constant byte address 0x4 - core index']
  #allocation1 [shape = 'u32[72,128]{1,0:T(1,128)}', space=vmem, size = 0x9000, scoped, tag = 'internal scratch']
  %s0 = inlined_call_operand.vmem [shape: bf16[8,18], index: 0, kind: input, shape index: {}]
  %s1 = inlined_call_operand.vmem [shape: bf16[18,8], index: 1, kind: input, shape index: {}]
  %s2 = inlined_call_operand.vmem [shape: f32[1,8], index: 2, kind: input, shape index: {}]
  %s3 = inlined_call_operand.vmem [shape: f32[1,8], index: 3, kind: input, shape index: {}]
  %s4 = inlined_call_operand.vmem [shape: bf16[8,8], index: 4, kind: output, shape index: {}]
  %s5 = sld [smem:[#allocation0]]
  $region26: #{flownet_forward.10} parent=0
    _
  %s7 = ssub.s32 1, %s5
  %s8 = scalar_select 0, %s7, %s5
  // Predicated region
  $region2: #{flownet_forward.10} parent=0 // pred_check
    _
  $region3: #{flownet_forward.10} parent=0 // pred_check_branch
    %10 = sbr.rel (0) target = $region5
  $region4: #{flownet_forward.10} parent=0 // pred_region
    _
  $region5: #{flownet_forward.10} parent=0 // pred_fallthru
    _
  // Predicated region
  $region6: #{flownet_forward.10} parent=0 // pred_check
    _
  $region7: #{flownet_forward.10} parent=0 // pred_check_branch
    %12 = sbr.rel (0) target = $region9
  $region8: #{flownet_forward.10} parent=0 // pred_region
    _
  $region9: #{flownet_forward.10} parent=0 // pred_fallthru
    _
  // Predicated region
  $region10: #{flownet_forward.10} parent=0 // pred_check
    _
  $region11: #{flownet_forward.10} parent=0 // pred_check_branch
    %14 = sbr.rel (0) target = $region13
  $region12: #{flownet_forward.10} parent=0 // pred_region
    _
  $region13: #{flownet_forward.10} parent=0 // pred_fallthru
    _
  // Predicated region
  $region14: #{flownet_forward.10} parent=0 // pred_check
    _
  $region15: #{flownet_forward.10} parent=0 // pred_check_branch
    %16 = sbr.rel (0) target = $region17
  $region16: #{flownet_forward.10} parent=0 // pred_region
    _
  $region17: #{flownet_forward.10} parent=0 // pred_fallthru
    _
  %v18 = vld [vmem:[%s0] sm:$0xf]
  %v19 = vld [vmem:[%s1] sm:$0xf]
  %v20 = vld [vmem:[%s1 + $0x4] sm:$0xf]
  %v21 = vld [vmem:[%s1 + $0x8] sm:$0x1]
  %v22 = vld [vmem:[%s2] sm:$0x1]
  %v24 = vperm.slane %v22, 0
  %v29 = vunpack.c.l.b16 %v19
  %v30 = vunpack.c.l.b16 %v20
  %v31 = vunpack.c.l.b16 %v21
  %v32 = vpack.c.b16 %v30, %v29
  %v33 = vpack.c.b16 %v31, %v31
  %vm35 = vcmask 146432
  %v37 = vsel %vm35, %v18, 0
  %vm39 = vcmask 1040384
  %v41 = vsel %vm39, %v33, 0
  %43 = vmatpush.bf16.msra.mxu0 0
  %44 = vmatpush.bf16.msra.mxu0 0
  %45 = vmatpush.bf16.msra.mxu0 0
  %46 = vmatpush.bf16.msra.mxu0 0
  %47 = vmatpush.bf16.msra.mxu0 0
  %48 = vmatpush.bf16.msra.mxu0 0
  %49 = vmatpush.bf16.msra.mxu0 %v41
  %50 = vmatpush.bf16.msra.mxu0 %v32
  %51 = vmatmul.bf16.gmra.mxu0 %v37
  %v52 = vpop.f32.mrf.mxu0
  %v53 = vadd.f32 %v24, %v52
  %v54 = vpop.f32.mrf.mxu0
  %55 = vdwg.mxu0
  %vm56 = vcmp.ge.f32.partialorder %v53, 0.0
  %v57 = vld [vmem:[%s3] sm:$0x1]
  %v59 = vperm.slane %v57, 0
  %v61 = vmul.f32 %v53, %v59
  %v62 = vsel %vm56, %v53, %v61
  %v63 = vpack.c.bf16 %v62, %v62
  %vm64 = vcmask 60416
  %65 = vst.msk [vmem:[%s4] sm:$0xf] %vm64, %v63
  // Predicated region
  $region18: #{flownet_forward.10} parent=0 // pred_check
    _
  $region19: #{flownet_forward.10} parent=0 // pred_check_branch
    %67 = sbr.rel (0) target = $region21
  $region20: #{flownet_forward.10} parent=0 // pred_region
    _
  $region21: #{flownet_forward.10} parent=0 // pred_fallthru
    _
  // Predicated region
  $region22: #{flownet_forward.10} parent=0 // pred_check
    _
  $region23: #{flownet_forward.10} parent=0 // pred_check_branch
    %69 = sbr.rel (0) target = $region25
  $region24: #{flownet_forward.10} parent=0 // pred_region
    _
  $region25: #{flownet_forward.10} parent=0 // pred_fallthru
    _

// kernel: flownet_forward.11
$region0: #{flownet_forward.11}
  #allocation0 [shape = 'u32[]', space=smem, size = 0x4, offset = 0x4, fixed_abs, tag = 'smem constant byte address 0x4 - core index']
  #allocation1 [shape = 'u32[72,128]{1,0:T(1,128)}', space=vmem, size = 0x9000, scoped, tag = 'internal scratch']
  %s0 = inlined_call_operand.vmem [shape: bf16[32,234], index: 0, kind: input, shape index: {}]
  %s1 = inlined_call_operand.vmem [shape: bf16[234,34], index: 1, kind: input, shape index: {}]
  %s2 = inlined_call_operand.vmem [shape: f32[1,34], index: 2, kind: input, shape index: {}]
  %s3 = inlined_call_operand.vmem [shape: f32[1,34], index: 3, kind: input, shape index: {}]
  %s4 = inlined_call_operand.vmem [shape: bf16[32,34], index: 4, kind: output, shape index: {}]
  %s5 = sld [smem:[#allocation0]]
  $region26: #{flownet_forward.11} parent=0
    _
  %s7 = ssub.s32 1, %s5
  %s8 = scalar_select 0, %s7, %s5
  // Predicated region
  $region2: #{flownet_forward.11} parent=0 // pred_check
    _
  $region3: #{flownet_forward.11} parent=0 // pred_check_branch
    %10 = sbr.rel (0) target = $region5
  $region4: #{flownet_forward.11} parent=0 // pred_region
    _
  $region5: #{flownet_forward.11} parent=0 // pred_fallthru
    _
  // Predicated region
  $region6: #{flownet_forward.11} parent=0 // pred_check
    _
  $region7: #{flownet_forward.11} parent=0 // pred_check_branch
    %12 = sbr.rel (0) target = $region9
  $region8: #{flownet_forward.11} parent=0 // pred_region
    _
  $region9: #{flownet_forward.11} parent=0 // pred_fallthru
    _
  // Predicated region
  $region10: #{flownet_forward.11} parent=0 // pred_check
    _
  $region11: #{flownet_forward.11} parent=0 // pred_check_branch
    %14 = sbr.rel (0) target = $region13
  $region12: #{flownet_forward.11} parent=0 // pred_region
    _
  $region13: #{flownet_forward.11} parent=0 // pred_fallthru
    _
  // Predicated region
  $region14: #{flownet_forward.11} parent=0 // pred_check
    _
  $region15: #{flownet_forward.11} parent=0 // pred_check_branch
    %16 = sbr.rel (0) target = $region17
  $region16: #{flownet_forward.11} parent=0 // pred_region
    _
  $region17: #{flownet_forward.11} parent=0 // pred_fallthru
    _
  %v18 = vld [vmem:[%s0] sm:$0xff]
  %v19 = vld [vmem:[%s0 + $0x8] sm:$0xff]
  %v20 = vld [vmem:[%s0 + $0x10] sm:$0xff]
  %v21 = vld [vmem:[%s0 + $0x18] sm:$0xff]
  %v22 = vld [vmem:[%s1] sm:$0xf]
  %v23 = vld [vmem:[%s1 + $0x4] sm:$0xf]
  %v24 = vld [vmem:[%s1 + $0x8] sm:$0xf]
  %v25 = vld [vmem:[%s1 + $0xc] sm:$0xf]
  %v26 = vld [vmem:[%s1 + $0x10] sm:$0xf]
  %v27 = vld [vmem:[%s1 + $0x14] sm:$0xf]
  %v28 = vld [vmem:[%s1 + $0x18] sm:$0xf]
  %v29 = vld [vmem:[%s1 + $0x1c] sm:$0xf]
  %v30 = vld [vmem:[%s1 + $0x20] sm:$0xf]
  %v31 = vld [vmem:[%s1 + $0x24] sm:$0xf]
  %v32 = vld [vmem:[%s1 + $0x28] sm:$0xf]
  %v33 = vld [vmem:[%s1 + $0x2c] sm:$0xf]
  %v34 = vld [vmem:[%s1 + $0x30] sm:$0xf]
  %v35 = vld [vmem:[%s1 + $0x34] sm:$0xf]
  %v36 = vld [vmem:[%s1 + $0x38] sm:$0xf]
  %v37 = vld [vmem:[%s1 + $0x3c] sm:$0xf]
  %v38 = vld [vmem:[%s1 + $0x40] sm:$0xf]
  %v39 = vld [vmem:[%s1 + $0x44] sm:$0xf]
  %v40 = vld [vmem:[%s1 + $0x48] sm:$0xf]
  %v41 = vld [vmem:[%s1 + $0x4c] sm:$0xf]
  %v42 = vld [vmem:[%s1 + $0x50] sm:$0xf]
  %v43 = vld [vmem:[%s1 + $0x54] sm:$0xf]
  %v44 = vld [vmem:[%s1 + $0x58] sm:$0xf]
  %v45 = vld [vmem:[%s1 + $0x5c] sm:$0xf]
  %v46 = vld [vmem:[%s1 + $0x60] sm:$0xf]
  %v47 = vld [vmem:[%s1 + $0x64] sm:$0xf]
  %v48 = vld [vmem:[%s1 + $0x68] sm:$0xf]
  %v49 = vld [vmem:[%s1 + $0x6c] sm:$0xf]
  %v50 = vld [vmem:[%s1 + $0x70] sm:$0xf]
  %v51 = vld [vmem:[%s1 + $0x74] sm:$0x1]
  %v52 = vld [vmem:[%s2] sm:$0x1]
  %v54 = vperm.slane %v52, 0
  %v60 = vunpack.c.l.b16 %v18
  %v61 = vunpack.c.h.b16 %v18
  %v62 = vunpack.c.l.b16 %v19
  %v63 = vunpack.c.h.b16 %v19
  %v64 = vunpack.c.l.b16 %v20
  %v65 = vunpack.c.h.b16 %v20
  %v66 = vunpack.c.l.b16 %v21
  %v67 = vunpack.c.h.b16 %v21
  %v68 = vpack.c.b16 %v62, %v60
  %v69 = vpack.c.b16 %v63, %v61
  %v70 = vpack.c.b16 %v66, %v64
  %v71 = vpack.c.b16 %v67, %v65
  %v104 = vunpack.c.l.b16 %v22
  %v105 = vunpack.c.l.b16 %v23
  %v106 = vunpack.c.l.b16 %v24
  %v107 = vunpack.c.l.b16 %v25
  %v108 = vunpack.c.l.b16 %v26
  %v109 = vunpack.c.l.b16 %v27
  %v110 = vunpack.c.l.b16 %v28
  %v111 = vunpack.c.l.b16 %v29
  %v112 = vunpack.c.l.b16 %v30
  %v113 = vunpack.c.l.b16 %v31
  %v114 = vunpack.c.l.b16 %v32
  %v115 = vunpack.c.l.b16 %v33
  %v116 = vunpack.c.l.b16 %v34
  %v117 = vunpack.c.l.b16 %v35
  %v118 = vunpack.c.l.b16 %v36
  %v119 = vunpack.c.l.b16 %v37
  %v120 = vunpack.c.l.b16 %v38
  %v121 = vunpack.c.l.b16 %v39
  %v122 = vunpack.c.l.b16 %v40
  %v123 = vunpack.c.l.b16 %v41
  %v124 = vunpack.c.l.b16 %v42
  %v125 = vunpack.c.l.b16 %v43
  %v126 = vunpack.c.l.b16 %v44
  %v127 = vunpack.c.l.b16 %v45
  %v128 = vunpack.c.l.b16 %v46
  %v129 = vunpack.c.l.b16 %v47
  %v130 = vunpack.c.l.b16 %v48
  %v131 = vunpack.c.l.b16 %v49
  %v132 = vunpack.c.l.b16 %v50
  %v133 = vunpack.c.l.b16 %v51
  %v134 = vpack.c.b16 %v105, %v104
  %v135 = vpack.c.b16 %v107, %v106
  %v136 = vpack.c.b16 %v109, %v108
  %v137 = vpack.c.b16 %v111, %v110
  %v138 = vpack.c.b16 %v113, %v112
  %v139 = vpack.c.b16 %v115, %v114
  %v140 = vpack.c.b16 %v117, %v116
  %v141 = vpack.c.b16 %v119, %v118
  %v142 = vpack.c.b16 %v121, %v120
  %v143 = vpack.c.b16 %v123, %v122
  %v144 = vpack.c.b16 %v125, %v124
  %v145 = vpack.c.b16 %v127, %v126
  %v146 = vpack.c.b16 %v129, %v128
  %v147 = vpack.c.b16 %v131, %v130
  %v148 = vpack.c.b16 %v133, %v132
  %vm163 = vcmask 867328
  %v165 = vsel %vm163, %v69, 0
  %v168 = vsel %vm163, %v71, 0
  %vm170 = vcmask 1044480
  %v172 = vsel %vm170, %v148, 0
  %174 = vmatpush.bf16.msra.mxu0 %v141
  %175 = vmatpush.bf16.msra.mxu0 %v140
  %176 = vmatpush.bf16.msra.mxu0 %v139
  %177 = vmatpush.bf16.msra.mxu0 %v138
  %178 = vmatpush.bf16.msra.mxu0 %v137
  %179 = vmatpush.bf16.msra.mxu0 %v136
  %180 = vmatpush.bf16.msra.mxu0 %v135
  %181 = vmatpush.bf16.msra.mxu0 %v134
  %182 = vmatmul.bf16.gmra.mxu0 %v68
  %v183 = vpop.f32.mrf.mxu0
  %v184 = vadd.f32 %v54, %v183
  %v185 = vpop.f32.mrf.mxu0
  %v186 = vadd.f32 %v54, %v185
  %187 = vmatmul.bf16.gmra.mxu0 %v70
  %v188 = vpop.f32.mrf.mxu0
  %v189 = vadd.f32 %v54, %v188
  %v190 = vpop.f32.mrf.mxu0
  %v191 = vadd.f32 %v54, %v190
  %192 = vdwg.mxu0
  %193 = vmatpush.bf16.msra.mxu0 0
  %194 = vmatpush.bf16.msra.mxu0 %v172
  %195 = vmatpush.bf16.msra.mxu0 %v147
  %196 = vmatpush.bf16.msra.mxu0 %v146
  %197 = vmatpush.bf16.msra.mxu0 %v145
  %198 = vmatpush.bf16.msra.mxu0 %v144
  %199 = vmatpush.bf16.msra.mxu0 %v143
  %200 = vmatpush.bf16.msra.mxu0 %v142
  %201 = vmatmul.bf16.gmra.mxu0 %v165
  %v202 = vpop.f32.mrf.mxu0
  %v203 = vadd.f32 %v184, %v202
  %v204 = vpop.f32.mrf.mxu0
  %v205 = vadd.f32 %v186, %v204
  %206 = vmatmul.bf16.gmra.mxu0 %v168
  %v207 = vpop.f32.mrf.mxu0
  %v208 = vadd.f32 %v189, %v207
  %v209 = vpop.f32.mrf.mxu0
  %v210 = vadd.f32 %v191, %v209
  %211 = vdwg.mxu0
  %vm212 = vcmp.ge.f32.partialorder %v203, 0.0
  %vm213 = vcmp.ge.f32.partialorder %v205, 0.0
  %vm214 = vcmp.ge.f32.partialorder %v208, 0.0
  %vm215 = vcmp.ge.f32.partialorder %v210, 0.0
  %v216 = vld [vmem:[%s3] sm:$0x1]
  %v218 = vperm.slane %v216, 0
  %v220 = vmul.f32 %v203, %v218
  %v221 = vmul.f32 %v205, %v218
  %v222 = vmul.f32 %v208, %v218
  %v223 = vmul.f32 %v210, %v218
  %v224 = vsel %vm212, %v203, %v220
  %v225 = vsel %vm213, %v205, %v221
  %v226 = vsel %vm214, %v208, %v222
  %v227 = vsel %vm215, %v210, %v223
  %v228 = vpack.c.bf16 %v224, %v224
  %v229 = vpack.c.bf16 %v225, %v225
  %v230 = vpack.c.bf16 %v226, %v226
  %v231 = vpack.c.bf16 %v227, %v227
  %vm232 = vcmask 273408
  %233 = vst.msk [vmem:[%s4] sm:$0xf] %vm232, %v228
  %234 = vst.msk [vmem:[%s4 + $0x4] sm:$0xf] %vm232, %v229
  %235 = vst.msk [vmem:[%s4 + $0x8] sm:$0xf] %vm232, %v230
  %236 = vst.msk [vmem:[%s4 + $0xc] sm:$0xf] %vm232, %v231
  // Predicated region
  $region18: #{flownet_forward.11} parent=0 // pred_check
    _
  $region19: #{flownet_forward.11} parent=0 // pred_check_branch
    %238 = sbr.rel (0) target = $region21
  $region20: #{flownet_forward.11} parent=0 // pred_region
    _
  $region21: #{flownet_forward.11} parent=0 // pred_fallthru
    _
  // Predicated region
  $region22: #{flownet_forward.11} parent=0 // pred_check
    _
  $region23: #{flownet_forward.11} parent=0 // pred_check_branch
    %240 = sbr.rel (0) target = $region25
  $region24: #{flownet_forward.11} parent=0 // pred_region
    _
  $region25: #{flownet_forward.11} parent=0 // pred_fallthru
    _

</llo_original>
